<compile_context>
chip_gen: v7x
topology: tpu7x:2x2x1
jax: 0.10.0
libtpu: 0.0.40
codegen_flags: <defaults>
</compile_context>

<pallas_src>
import functools

import jax
import jax.numpy as jnp
from jax.experimental import pallas as pl
from jax.experimental.pallas import tpu as pltpu

EPS = 1e-5          # torch.nn.LayerNorm default eps
NEG_BIAS = -1e30    # additive mask bias (finite; diagonal always unmasked)


def _layernorm(x, gamma, beta):
    # PyTorch LayerNorm: biased variance over last dim, affine.
    mean = jnp.mean(x, axis=-1, keepdims=True)
    var = jnp.mean((x - mean) ** 2, axis=-1, keepdims=True)
    return (x - mean) * jax.lax.rsqrt(var + EPS) * gamma + beta


# ----------------------------------------------------------------------------
# Fused whole-network kernel: grid axis = layer index ("arbitrary").
#   act_ref (VMEM scratch) carries the (B*T, E) activation across layers.
#   Last grid step also applies the LM head into the (lane-padded) logits.
# ----------------------------------------------------------------------------
def transformer_kernel(mask_ref, x_ref,
                       g1_ref, b1_ref, wqkv_ref,
                       g2_ref, b2_ref, wf1_ref, bf1_ref, wf2_ref, bf2_ref,
                       hw_ref, hb_ref,
                       logits_ref,
                       act_ref,
                       *, n_heads, head_size):
    layer = pl.program_id(0)
    n_layers = pl.num_programs(0)
    H = head_size

    @pl.when(layer == 0)
    def _():
        act_ref[...] = x_ref[...]

    x = act_ref[...]                                       # (BT, E)

    # ---- LN1 ----
    y = _layernorm(x, g1_ref[0], b1_ref[0])

    # ---- fused QKV projection: one lane-dense matmul (E -> 3*nh*H) ----
    qkv = jnp.dot(y, wqkv_ref[0], preferred_element_type=jnp.float32)

    def split_heads(off):                                  # -> (nh, BT, H)
        return jnp.stack(
            [qkv[:, off + h * H: off + (h + 1) * H] for h in range(n_heads)],
            axis=0)

    Q = split_heads(0)
    K = split_heads(n_heads * H)
    V = split_heads(2 * n_heads * H)

    # ---- causal attention, batched over heads; heads are SUMMED ----
    scale = H ** -0.5
    S = jnp.einsum('hnd,hmd->hnm', Q, K,
                   preferred_element_type=jnp.float32) * scale     # (nh, BT, BT)
    S = S + mask_ref[...][None, :, :]                              # additive block-causal bias
    m = jnp.max(S, axis=-1, keepdims=True)
    e = jnp.exp(S - m)
    p = e * pl.reciprocal(jnp.sum(e, axis=-1, keepdims=True), approx=True)
    ctx = jnp.einsum('hnm,hmd->hnd', p, V,
                     preferred_element_type=jnp.float32)           # (nh, BT, H)
    attn = jnp.sum(ctx, axis=0)                                    # (BT, H); H == E

    y = attn + x                                                   # residual with block input

    # ---- LN2 + FFN; residual with LN2 output (matches reference module) ----
    y2 = _layernorm(y, g2_ref[0], b2_ref[0])
    hdn = jnp.dot(y2, wf1_ref[0], preferred_element_type=jnp.float32) + bf1_ref[0]
    hdn = jnp.maximum(hdn, 0.0)                                    # ReLU
    ffn = jnp.dot(hdn, wf2_ref[0], preferred_element_type=jnp.float32) + bf2_ref[0]
    new_act = ffn + y2
    act_ref[...] = new_act

    # ---- final LM head (lane-padded vocab), emitted once on the last layer ----
    @pl.when(layer == n_layers - 1)
    def _():
        logits_ref[...] = (jnp.dot(new_act, hw_ref[...],
                                   preferred_element_type=jnp.float32)
                           + hb_ref[...])


def _per_layer_spec(arr):
    block = (1,) + arr.shape[1:]
    zeros = (0,) * (arr.ndim - 1)
    return pl.BlockSpec(block, lambda l: (l,) + zeros)


def _shared_spec(shape):
    zeros = (0,) * len(shape)
    return pl.BlockSpec(shape, lambda l: zeros)


def transformer_forward(tokens, params):
    """Pallas forward pass. Embedding gathers are glue (plain JAX)."""
    packed = params["packed"]
    B, T = tokens.shape
    E = params["embedding"].shape[-1]
    nh = params["n_heads"]
    H = params["head_size"]
    V = params["nbr_tokens"]
    assert H == E, "MultiHead sums heads; residual requires head_size == n_embedding"

    y = params["embedding"][tokens] + params["pos_embedding"][:T][None]   # (B, T, E)
    x_flat = y.reshape(B * T, E).astype(jnp.float32)

    BT = B * T
    # Block-diagonal causal additive bias over the flattened (B*T) axis:
    # row attends to col iff same batch element AND col <= row.
    idx = jnp.arange(BT)
    same_batch = (idx[:, None] // T) == (idx[None, :] // T)
    causal = idx[:, None] >= idx[None, :]
    mask_bias = jnp.where(same_batch & causal, 0.0, NEG_BIAS).astype(jnp.float32)

    L = packed["g1"].shape[0]
    Vpad = packed["head_w"].shape[-1]

    kernel = functools.partial(transformer_kernel, n_heads=nh, head_size=H)

    logits_pad = pl.pallas_call(
        kernel,
        out_shape=jax.ShapeDtypeStruct((BT, Vpad), jnp.float32),
        grid_spec=pltpu.PrefetchScalarGridSpec(
            num_scalar_prefetch=0,
            grid=(L,),
            in_specs=[
                _shared_spec((BT, BT)),                 # mask bias
                _shared_spec((BT, E)),                  # input activation
                _per_layer_spec(packed["g1"]), _per_layer_spec(packed["b1"]),
                _per_layer_spec(packed["wqkv"]),
                _per_layer_spec(packed["g2"]), _per_layer_spec(packed["b2"]),
                _per_layer_spec(packed["wf1"]), _per_layer_spec(packed["bf1"]),
                _per_layer_spec(packed["wf2"]), _per_layer_spec(packed["bf2"]),
                _shared_spec(packed["head_w"].shape),
                _shared_spec(packed["head_b"].shape),
            ],
            out_specs=_shared_spec((BT, Vpad)),
            scratch_shapes=[pltpu.VMEM((BT, E), jnp.float32)],
        ),
        compiler_params=pltpu.CompilerParams(dimension_semantics=("arbitrary",)),
    )(mask_bias, x_flat,
      packed["g1"], packed["b1"], packed["wqkv"],
      packed["g2"], packed["b2"],
      packed["wf1"], packed["bf1"], packed["wf2"], packed["bf2"],
      packed["head_w"], packed["head_b"])

    return logits_pad[:, :V].reshape(B, T, V)


# ----------------------------------------------------------------------------
# Parameters (deterministic, synthetic) + packing for the fused kernel
# ----------------------------------------------------------------------------
def pack_params(params):
    blocks = params["blocks"]

    def stack(name):
        return jnp.stack([b[name] for b in blocks], axis=0)

    def fuse_qkv(b):
        def flat(w):                       # (nh, E, H) -> (E, nh*H), head-major columns
            nh, E, H = w.shape
            return jnp.transpose(w, (1, 0, 2)).reshape(E, nh * H)
        return jnp.concatenate([flat(b["wq"]), flat(b["wk"]), flat(b["wv"])], axis=1)

    V = params["head_w"].shape[-1]
    Vpad = ((V + 127) // 128) * 128        # lane-dense logits; sliced in wrapper
    return {
        "g1": stack("g1"), "b1": stack("b1"),
        "wqkv": jnp.stack([fuse_qkv(b) for b in blocks], axis=0),
        "g2": stack("g2"), "b2": stack("b2"),
        "wf1": stack("wf1"), "bf1": stack("bf1"),
        "wf2": stack("wf2"), "bf2": stack("bf2"),
        "head_w": jnp.pad(params["head_w"], ((0, 0), (0, Vpad - V))),
        "head_b": jnp.pad(params["head_b"], ((0, 0), (0, Vpad - V))),
    }


def init_params(key, nbr_tokens, n, n_embedding, n_blocks, n_heads, head_size):
    def dense(k, fan_in, shape):
        return jax.random.normal(k, shape, jnp.float32) / jnp.sqrt(float(fan_in))

    keys = jax.random.split(key, 3 + n_blocks)
    F4 = 4 * n_embedding
    params = {
        "nbr_tokens": nbr_tokens,
        "n_heads": n_heads,
        "head_size": head_size,
        "embedding": 0.02 * jax.random.normal(keys[0], (nbr_tokens, n_embedding), jnp.float32),
        "pos_embedding": 0.02 * jax.random.normal(keys[1], (n, n_embedding), jnp.float32),
        "head_w": dense(keys[2], n_embedding, (n_embedding, nbr_tokens)),
        "head_b": jnp.zeros((1, nbr_tokens), jnp.float32),
        "blocks": [],
    }
    for i in range(n_blocks):
        bk = jax.random.split(keys[3 + i], 5)
        params["blocks"].append(dict(
            g1=jnp.ones((1, n_embedding), jnp.float32),
            b1=jnp.zeros((1, n_embedding), jnp.float32),
            wq=dense(bk[0], n_embedding, (n_heads, n_embedding, head_size)),
            wk=dense(bk[1], n_embedding, (n_heads, n_embedding, head_size)),
            wv=dense(bk[2], n_embedding, (n_heads, n_embedding, head_size)),
            g2=jnp.ones((1, n_embedding), jnp.float32),
            b2=jnp.zeros((1, n_embedding), jnp.float32),
            wf1=dense(bk[3], n_embedding, (n_embedding, F4)),
            bf1=jnp.zeros((1, F4), jnp.float32),
            wf2=dense(bk[4], F4, (F4, n_embedding)),
            bf2=jnp.zeros((1, n_embedding), jnp.float32),
        ))
    params["packed"] = pack_params(params)
    return params


# Pure-JAX reference (same math as the PyTorch module) for a sanity check.
def reference_forward(tokens, params):
    T = tokens.shape[1]
    y = params["embedding"][tokens] + params["pos_embedding"][:T][None]
    mask = jnp.tril(jnp.ones((T, T), bool))
    for bp in params["blocks"]:
        x = y
        yn = _layernorm(x, bp["g1"], bp["b1"])
        H = bp["wq"].shape[-1]
        acc = 0.0
        for h in range(bp["wq"].shape[0]):
            Q = yn @ bp["wq"][h]; K = yn @ bp["wk"][h]; V = yn @ bp["wv"][h]
            A = (Q @ jnp.swapaxes(K, -1, -2)) * (H ** -0.5)
            A = jnp.where(mask, A, -jnp.inf)
            A = jax.nn.softmax(A, axis=-1)
            acc = acc + A @ V
        y = acc + x
        y2 = _layernorm(y, bp["g2"], bp["b2"])
        hdn = jnp.maximum(y2 @ bp["wf1"] + bp["bf1"], 0.0)
        y = (hdn @ bp["wf2"] + bp["bf2"]) + y2
    return y @ params["head_w"] + params["head_b"]


if __name__ == "__main__":
    # Small config: nbr_tokens=64, n(=block size)=8, n_embedding=32,
    # n_blocks=2, n_heads=2, head_size=32 (== n_embedding, required by the
    # head-sum + residual of the reference module), dropout=0.0.
    NBR_TOKENS, N, E, N_BLOCKS, N_HEADS, HEAD = 64, 8, 32, 2, 2, 32
    B, T = 2, 8

    key = jax.random.PRNGKey(0)
    pkey, tkey = jax.random.split(key)
    params = init_params(pkey, NBR_TOKENS, N, E, N_BLOCKS, N_HEADS, HEAD)
    tokens = jax.random.randint(tkey, (B, T), 0, NBR_TOKENS, dtype=jnp.int32)

    out = jax.block_until_ready(transformer_forward(tokens, params))
    ref = jax.block_until_ready(reference_forward(tokens, params))

    assert out.shape == (B, T, NBR_TOKENS)
    err = float(jnp.max(jnp.abs(out - ref)))
    assert err < 1e-2, f"Pallas output mismatch vs reference (max abs err {err})"

    print("KERNEL_OK")
</pallas_src>

<mosaic_0001>
module attributes {stable_mosaic.version = 11 : i64} {
  func.func @transformer_kernel(%arg0: i32, %arg1: memref<16x16xf32, #tpu.memory_space<vmem>>, %arg2: memref<16x32xf32, #tpu.memory_space<vmem>>, %arg3: memref<1x1x32xf32, #tpu.memory_space<vmem>>, %arg4: memref<1x1x32xf32, #tpu.memory_space<vmem>>, %arg5: memref<1x32x192xf32, #tpu.memory_space<vmem>>, %arg6: memref<1x1x32xf32, #tpu.memory_space<vmem>>, %arg7: memref<1x1x32xf32, #tpu.memory_space<vmem>>, %arg8: memref<1x32x128xf32, #tpu.memory_space<vmem>>, %arg9: memref<1x1x128xf32, #tpu.memory_space<vmem>>, %arg10: memref<1x128x32xf32, #tpu.memory_space<vmem>>, %arg11: memref<1x1x32xf32, #tpu.memory_space<vmem>>, %arg12: memref<32x128xf32, #tpu.memory_space<vmem>>, %arg13: memref<1x128xf32, #tpu.memory_space<vmem>>, %arg14: memref<16x128xf32, #tpu.memory_space<vmem>>, %arg15: memref<16x32xf32, #tpu.memory_space<vmem>>) attributes {dimension_semantics = [#tpu.dimension_semantics<arbitrary>], iteration_bounds = array<i64: 2>, scalar_prefetch = 0 : i64, scratch_operands = 1 : i64, tpu.core_type = #tpu.core_type<tc>, window_params = [{pipeline_mode = #tpu.pipeline_mode<synchronous>, transform_indices = @transform_0, window_bounds = array<i64: 16, 16>}, {pipeline_mode = #tpu.pipeline_mode<synchronous>, transform_indices = @transform_1, window_bounds = array<i64: 16, 32>}, {transform_indices = @transform_2, window_bounds = array<i64: 1, 1, 32>}, {transform_indices = @transform_3, window_bounds = array<i64: 1, 1, 32>}, {transform_indices = @transform_4, window_bounds = array<i64: 1, 32, 192>}, {transform_indices = @transform_5, window_bounds = array<i64: 1, 1, 32>}, {transform_indices = @transform_6, window_bounds = array<i64: 1, 1, 32>}, {transform_indices = @transform_7, window_bounds = array<i64: 1, 32, 128>}, {transform_indices = @transform_8, window_bounds = array<i64: 1, 1, 128>}, {transform_indices = @transform_9, window_bounds = array<i64: 1, 128, 32>}, {transform_indices = @transform_10, window_bounds = array<i64: 1, 1, 32>}, {pipeline_mode = #tpu.pipeline_mode<synchronous>, transform_indices = @transform_11, window_bounds = array<i64: 32, 128>}, {pipeline_mode = #tpu.pipeline_mode<synchronous>, transform_indices = @transform_12, window_bounds = array<i64: 1, 128>}, {pipeline_mode = #tpu.pipeline_mode<synchronous>, transform_indices = @transform_13, window_bounds = array<i64: 16, 128>}]} {
    %c0_i32 = arith.constant 0 : i32
    %0 = arith.cmpi eq, %arg0, %c0_i32 : i32
    %1 = arith.extui %0 : i1 to i32
    %c0_i32_0 = arith.constant 0 : i32
    %2 = arith.cmpi ne, %1, %c0_i32_0 : i32
    scf.if %2 {
      %c0_53 = arith.constant 0 : index
      %c0_54 = arith.constant 0 : index
      %115 = vector.load %arg2[%c0_53, %c0_54] : memref<16x32xf32, #tpu.memory_space<vmem>>, vector<16x32xf32>
      %c0_55 = arith.constant 0 : index
      %c0_56 = arith.constant 0 : index
      %116 = vector.load %arg15[%c0_55, %c0_56] : memref<16x32xf32, #tpu.memory_space<vmem>>, vector<16x32xf32>
      tpu.vector_store %arg15[%c0_55, %c0_56], %115 {strides = array<i32>} : memref<16x32xf32, #tpu.memory_space<vmem>>, vector<16x32xf32>,
    } else {
    }
    %c0 = arith.constant 0 : index
    %c0_1 = arith.constant 0 : index
    %3 = vector.load %arg15[%c0, %c0_1] : memref<16x32xf32, #tpu.memory_space<vmem>>, vector<16x32xf32>
    %c0_2 = arith.constant 0 : index
    %c0_3 = arith.constant 0 : index
    %c0_4 = arith.constant 0 : index
    %4 = vector.load %arg3[%c0_2, %c0_3, %c0_4] : memref<1x1x32xf32, #tpu.memory_space<vmem>>, vector<1x1x32xf32>
    %5 = vector.shape_cast %4 : vector<1x1x32xf32> to vector<1x32xf32>
    %c0_5 = arith.constant 0 : index
    %c0_6 = arith.constant 0 : index
    %c0_7 = arith.constant 0 : index
    %6 = vector.load %arg4[%c0_5, %c0_6, %c0_7] : memref<1x1x32xf32, #tpu.memory_space<vmem>>, vector<1x1x32xf32>
    %7 = vector.shape_cast %6 : vector<1x1x32xf32> to vector<1x32xf32>
    %cst = arith.constant dense<0.000000e+00> : vector<16xf32>
    %8 = vector.multi_reduction <add>, %3, %cst [1] : vector<16x32xf32> to vector<16xf32>
    %9 = vector.shape_cast %8 : vector<16xf32> to vector<16x1xf32>
    %cst_8 = arith.constant 3.200000e+01 : f32
    %10 = vector.broadcast %cst_8 : f32 to vector<16x1xf32>
    %11 = arith.divf %9, %10 : vector<16x1xf32>
    %12 = vector.broadcast %11 : vector<16x1xf32> to vector<16x32xf32>
    %13 = arith.subf %3, %12 : vector<16x32xf32>
    %14 = arith.mulf %13, %13 : vector<16x32xf32>
    %cst_9 = arith.constant dense<0.000000e+00> : vector<16xf32>
    %15 = vector.multi_reduction <add>, %14, %cst_9 [1] : vector<16x32xf32> to vector<16xf32>
    %16 = vector.shape_cast %15 : vector<16xf32> to vector<16x1xf32>
    %cst_10 = arith.constant 3.200000e+01 : f32
    %17 = vector.broadcast %cst_10 : f32 to vector<16x1xf32>
    %18 = arith.divf %16, %17 : vector<16x1xf32>
    %19 = vector.broadcast %11 : vector<16x1xf32> to vector<16x32xf32>
    %20 = arith.subf %3, %19 : vector<16x32xf32>
    %cst_11 = arith.constant 9.99999974E-6 : f32
    %21 = vector.broadcast %cst_11 : f32 to vector<16x1xf32>
    %22 = arith.addf %18, %21 : vector<16x1xf32>
    %23 = math.rsqrt %22 : vector<16x1xf32>
    %24 = vector.broadcast %23 : vector<16x1xf32> to vector<16x32xf32>
    %25 = arith.mulf %20, %24 : vector<16x32xf32>
    %26 = vector.broadcast %5 : vector<1x32xf32> to vector<16x32xf32>
    %27 = arith.mulf %25, %26 : vector<16x32xf32>
    %28 = vector.broadcast %7 : vector<1x32xf32> to vector<16x32xf32>
    %29 = arith.addf %27, %28 : vector<16x32xf32>
    %c0_12 = arith.constant 0 : index
    %c0_13 = arith.constant 0 : index
    %c0_14 = arith.constant 0 : index
    %30 = vector.load %arg5[%c0_12, %c0_13, %c0_14] : memref<1x32x192xf32, #tpu.memory_space<vmem>>, vector<1x32x192xf32>
    %31 = vector.shape_cast %30 : vector<1x32x192xf32> to vector<32x192xf32>
    %cst_15 = arith.constant dense<0.000000e+00> : vector<16x192xf32>
    %32 = tpu.matmul %29, %31, %cst_15 {dimension_numbers = #tpu.dot_dimension_numbers<[1], [0], [0], [1], [0, 0, 1, 1], [], []>} : vector<16x32xf32>, vector<32x192xf32>, vector<16x192xf32> -> vector<16x192xf32>
    %33 = vector.extract_strided_slice %32 {offsets = [0, 0], sizes = [16, 32], strides = [1, 1]} : vector<16x192xf32> to vector<16x32xf32>
    %34 = vector.extract_strided_slice %32 {offsets = [0, 32], sizes = [16, 32], strides = [1, 1]} : vector<16x192xf32> to vector<16x32xf32>
    %35 = vector.shape_cast %33 : vector<16x32xf32> to vector<1x16x32xf32>
    %36 = vector.shape_cast %34 : vector<16x32xf32> to vector<1x16x32xf32>
    %37 = tpu.concatenate %35, %36 in 0 : vector<1x16x32xf32>, vector<1x16x32xf32> -> vector<2x16x32xf32>
    %38 = vector.extract_strided_slice %32 {offsets = [0, 64], sizes = [16, 32], strides = [1, 1]} : vector<16x192xf32> to vector<16x32xf32>
    %39 = vector.extract_strided_slice %32 {offsets = [0, 96], sizes = [16, 32], strides = [1, 1]} : vector<16x192xf32> to vector<16x32xf32>
    %40 = vector.shape_cast %38 : vector<16x32xf32> to vector<1x16x32xf32>
    %41 = vector.shape_cast %39 : vector<16x32xf32> to vector<1x16x32xf32>
    %42 = tpu.concatenate %40, %41 in 0 : vector<1x16x32xf32>, vector<1x16x32xf32> -> vector<2x16x32xf32>
    %43 = vector.extract_strided_slice %32 {offsets = [0, 128], sizes = [16, 32], strides = [1, 1]} : vector<16x192xf32> to vector<16x32xf32>
    %44 = vector.extract_strided_slice %32 {offsets = [0, 160], sizes = [16, 32], strides = [1, 1]} : vector<16x192xf32> to vector<16x32xf32>
    %45 = vector.shape_cast %43 : vector<16x32xf32> to vector<1x16x32xf32>
    %46 = vector.shape_cast %44 : vector<16x32xf32> to vector<1x16x32xf32>
    %47 = tpu.concatenate %45, %46 in 0 : vector<1x16x32xf32>, vector<1x16x32xf32> -> vector<2x16x32xf32>
    "tpu.trace_start"() <{level = 10 : i32, message = "hnd,hmd->hnm"}> : () -> ()
    %cst_16 = arith.constant dense<0.000000e+00> : vector<2x16x16xf32>
    %48 = tpu.matmul %37, %42, %cst_16 {dimension_numbers = #tpu.dot_dimension_numbers<[2], [2], [1], [1], [0, 0, 0, 1, 1, 1], [0], [0]>} : vector<2x16x32xf32>, vector<2x16x32xf32>, vector<2x16x16xf32> -> vector<2x16x16xf32>
    "tpu.trace_stop"() : () -> ()
    %cst_17 = arith.constant 0.176776692 : f32
    %49 = vector.broadcast %cst_17 : f32 to vector<2x16x16xf32>
    %50 = arith.mulf %48, %49 : vector<2x16x16xf32>
    %c0_18 = arith.constant 0 : index
    %c0_19 = arith.constant 0 : index
    %51 = vector.load %arg1[%c0_18, %c0_19] : memref<16x16xf32, #tpu.memory_space<vmem>>, vector<16x16xf32>
    %52 = vector.shape_cast %51 : vector<16x16xf32> to vector<1x16x16xf32>
    %53 = vector.broadcast %52 : vector<1x16x16xf32> to vector<2x16x16xf32>
    %54 = arith.addf %50, %53 : vector<2x16x16xf32>
    %cst_20 = arith.constant dense<0xFF800000> : vector<2x16xf32>
    %55 = vector.multi_reduction <maximumf>, %54, %cst_20 [2] : vector<2x16x16xf32> to vector<2x16xf32>
    %56 = vector.shape_cast %55 : vector<2x16xf32> to vector<2x16x1xf32>
    %57 = vector.broadcast %56 : vector<2x16x1xf32> to vector<2x16x16xf32>
    %58 = arith.subf %54, %57 : vector<2x16x16xf32>
    %59 = math.exp %58 : vector<2x16x16xf32>
    %cst_21 = arith.constant dense<0.000000e+00> : vector<2x16xf32>
    %60 = vector.multi_reduction <add>, %59, %cst_21 [2] : vector<2x16x16xf32> to vector<2x16xf32>
    %61 = vector.shape_cast %60 : vector<2x16xf32> to vector<2x16x1xf32>
    %62 = tpu.reciprocal %61 {approx = true} : vector<2x16x1xf32> -> vector<2x16x1xf32>
    %63 = vector.broadcast %62 : vector<2x16x1xf32> to vector<2x16x16xf32>
    %64 = arith.mulf %59, %63 : vector<2x16x16xf32>
    "tpu.trace_start"() <{level = 10 : i32, message = "hnm,hmd->hnd"}> : () -> ()
    %cst_22 = arith.constant dense<0.000000e+00> : vector<2x16x32xf32>
    %65 = tpu.matmul %64, %47, %cst_22 {dimension_numbers = #tpu.dot_dimension_numbers<[2], [1], [1], [2], [0, 0, 0, 1, 1, 2], [0], [0]>} : vector<2x16x16xf32>, vector<2x16x32xf32>, vector<2x16x32xf32> -> vector<2x16x32xf32>
    "tpu.trace_stop"() : () -> ()
    %cst_23 = arith.constant dense<0.000000e+00> : vector<16x32xf32>
    %66 = vector.multi_reduction <add>, %65, %cst_23 [0] : vector<2x16x32xf32> to vector<16x32xf32>
    %67 = arith.addf %66, %3 : vector<16x32xf32>
    %c0_24 = arith.constant 0 : index
    %c0_25 = arith.constant 0 : index
    %c0_26 = arith.constant 0 : index
    %68 = vector.load %arg6[%c0_24, %c0_25, %c0_26] : memref<1x1x32xf32, #tpu.memory_space<vmem>>, vector<1x1x32xf32>
    %69 = vector.shape_cast %68 : vector<1x1x32xf32> to vector<1x32xf32>
    %c0_27 = arith.constant 0 : index
    %c0_28 = arith.constant 0 : index
    %c0_29 = arith.constant 0 : index
    %70 = vector.load %arg7[%c0_27, %c0_28, %c0_29] : memref<1x1x32xf32, #tpu.memory_space<vmem>>, vector<1x1x32xf32>
    %71 = vector.shape_cast %70 : vector<1x1x32xf32> to vector<1x32xf32>
    %cst_30 = arith.constant dense<0.000000e+00> : vector<16xf32>
    %72 = vector.multi_reduction <add>, %67, %cst_30 [1] : vector<16x32xf32> to vector<16xf32>
    %73 = vector.shape_cast %72 : vector<16xf32> to vector<16x1xf32>
    %cst_31 = arith.constant 3.200000e+01 : f32
    %74 = vector.broadcast %cst_31 : f32 to vector<16x1xf32>
    %75 = arith.divf %73, %74 : vector<16x1xf32>
    %76 = vector.broadcast %75 : vector<16x1xf32> to vector<16x32xf32>
    %77 = arith.subf %67, %76 : vector<16x32xf32>
    %78 = arith.mulf %77, %77 : vector<16x32xf32>
    %cst_32 = arith.constant dense<0.000000e+00> : vector<16xf32>
    %79 = vector.multi_reduction <add>, %78, %cst_32 [1] : vector<16x32xf32> to vector<16xf32>
    %80 = vector.shape_cast %79 : vector<16xf32> to vector<16x1xf32>
    %cst_33 = arith.constant 3.200000e+01 : f32
    %81 = vector.broadcast %cst_33 : f32 to vector<16x1xf32>
    %82 = arith.divf %80, %81 : vector<16x1xf32>
    %83 = vector.broadcast %75 : vector<16x1xf32> to vector<16x32xf32>
    %84 = arith.subf %67, %83 : vector<16x32xf32>
    %cst_34 = arith.constant 9.99999974E-6 : f32
    %85 = vector.broadcast %cst_34 : f32 to vector<16x1xf32>
    %86 = arith.addf %82, %85 : vector<16x1xf32>
    %87 = math.rsqrt %86 : vector<16x1xf32>
    %88 = vector.broadcast %87 : vector<16x1xf32> to vector<16x32xf32>
    %89 = arith.mulf %84, %88 : vector<16x32xf32>
    %90 = vector.broadcast %69 : vector<1x32xf32> to vector<16x32xf32>
    %91 = arith.mulf %89, %90 : vector<16x32xf32>
    %92 = vector.broadcast %71 : vector<1x32xf32> to vector<16x32xf32>
    %93 = arith.addf %91, %92 : vector<16x32xf32>
    %c0_35 = arith.constant 0 : index
    %c0_36 = arith.constant 0 : index
    %c0_37 = arith.constant 0 : index
    %94 = vector.load %arg8[%c0_35, %c0_36, %c0_37] : memref<1x32x128xf32, #tpu.memory_space<vmem>>, vector<1x32x128xf32>
    %95 = vector.shape_cast %94 : vector<1x32x128xf32> to vector<32x128xf32>
    %cst_38 = arith.constant dense<0.000000e+00> : vector<16x128xf32>
    %96 = tpu.matmul %93, %95, %cst_38 {dimension_numbers = #tpu.dot_dimension_numbers<[1], [0], [0], [1], [0, 0, 1, 1], [], []>} : vector<16x32xf32>, vector<32x128xf32>, vector<16x128xf32> -> vector<16x128xf32>
    %c0_39 = arith.constant 0 : index
    %c0_40 = arith.constant 0 : index
    %c0_41 = arith.constant 0 : index
    %97 = vector.load %arg9[%c0_39, %c0_40, %c0_41] : memref<1x1x128xf32, #tpu.memory_space<vmem>>, vector<1x1x128xf32>
    %98 = vector.shape_cast %97 : vector<1x1x128xf32> to vector<1x128xf32>
    %99 = vector.broadcast %98 : vector<1x128xf32> to vector<16x128xf32>
    %100 = arith.addf %96, %99 : vector<16x128xf32>
    %cst_42 = arith.constant 0.000000e+00 : f32
    %101 = vector.broadcast %cst_42 : f32 to vector<16x128xf32>
    %102 = arith.maximumf %100, %101 : vector<16x128xf32>
    %c0_43 = arith.constant 0 : index
    %c0_44 = arith.constant 0 : index
    %c0_45 = arith.constant 0 : index
    %103 = vector.load %arg10[%c0_43, %c0_44, %c0_45] : memref<1x128x32xf32, #tpu.memory_space<vmem>>, vector<1x128x32xf32>
    %104 = vector.shape_cast %103 : vector<1x128x32xf32> to vector<128x32xf32>
    %cst_46 = arith.constant dense<0.000000e+00> : vector<16x32xf32>
    %105 = tpu.matmul %102, %104, %cst_46 {dimension_numbers = #tpu.dot_dimension_numbers<[1], [0], [0], [1], [0, 0, 1, 1], [], []>} : vector<16x128xf32>, vector<128x32xf32>, vector<16x32xf32> -> vector<16x32xf32>
    %c0_47 = arith.constant 0 : index
    %c0_48 = arith.constant 0 : index
    %c0_49 = arith.constant 0 : index
    %106 = vector.load %arg11[%c0_47, %c0_48, %c0_49] : memref<1x1x32xf32, #tpu.memory_space<vmem>>, vector<1x1x32xf32>
    %107 = vector.shape_cast %106 : vector<1x1x32xf32> to vector<1x32xf32>
    %108 = vector.broadcast %107 : vector<1x32xf32> to vector<16x32xf32>
    %109 = arith.addf %105, %108 : vector<16x32xf32>
    %110 = arith.addf %109, %93 : vector<16x32xf32>
    %c0_50 = arith.constant 0 : index
    %c0_51 = arith.constant 0 : index
    %111 = vector.load %arg15[%c0_50, %c0_51] : memref<16x32xf32, #tpu.memory_space<vmem>>, vector<16x32xf32>
    tpu.vector_store %arg15[%c0_50, %c0_51], %110 {strides = array<i32>} : memref<16x32xf32, #tpu.memory_space<vmem>>, vector<16x32xf32>,
    %c1_i32 = arith.constant 1 : i32
    %112 = arith.cmpi eq, %arg0, %c1_i32 : i32
    %113 = arith.extui %112 : i1 to i32
    %c0_i32_52 = arith.constant 0 : i32
    %114 = arith.cmpi ne, %113, %c0_i32_52 : i32
    scf.if %114 {
      %c0_53 = arith.constant 0 : index
      %c0_54 = arith.constant 0 : index
      %115 = vector.load %arg12[%c0_53, %c0_54] : memref<32x128xf32, #tpu.memory_space<vmem>>, vector<32x128xf32>
      %cst_55 = arith.constant dense<0.000000e+00> : vector<16x128xf32>
      %116 = tpu.matmul %110, %115, %cst_55 {dimension_numbers = #tpu.dot_dimension_numbers<[1], [0], [0], [1], [0, 0, 1, 1], [], []>} : vector<16x32xf32>, vector<32x128xf32>, vector<16x128xf32> -> vector<16x128xf32>
      %c0_56 = arith.constant 0 : index
      %c0_57 = arith.constant 0 : index
      %117 = vector.load %arg13[%c0_56, %c0_57] : memref<1x128xf32, #tpu.memory_space<vmem>>, vector<1x128xf32>
      %118 = vector.broadcast %117 : vector<1x128xf32> to vector<16x128xf32>
      %119 = arith.addf %116, %118 : vector<16x128xf32>
      %c0_58 = arith.constant 0 : index
      %c0_59 = arith.constant 0 : index
      %120 = vector.load %arg14[%c0_58, %c0_59] : memref<16x128xf32, #tpu.memory_space<vmem>>, vector<16x128xf32>
      tpu.vector_store %arg14[%c0_58, %c0_59], %119 {strides = array<i32>} : memref<16x128xf32, #tpu.memory_space<vmem>>, vector<16x128xf32>,
    } else {
    }
    return
  }
  func.func @transform_0(%arg0: i32) -> (i32, i32) {
    %c0_i32 = arith.constant 0 : i32
    %c0_i32_0 = arith.constant 0 : i32
    %c0_i32_1 = arith.constant 0 : i32
    return %c0_i32, %c0_i32_0 : i32, i32
  }
  func.func @transform_1(%arg0: i32) -> (i32, i32) {
    %c0_i32 = arith.constant 0 : i32
    %c0_i32_0 = arith.constant 0 : i32
    %c0_i32_1 = arith.constant 0 : i32
    return %c0_i32, %c0_i32_0 : i32, i32
  }
  func.func @transform_2(%arg0: i32) -> (i32, i32, i32) {
    %c0_i32 = arith.constant 0 : i32
    %c0_i32_0 = arith.constant 0 : i32
    %c0_i32_1 = arith.constant 0 : i32
    return %arg0, %c0_i32, %c0_i32_0 : i32, i32, i32
  }
  func.func @transform_3(%arg0: i32) -> (i32, i32, i32) {
    %c0_i32 = arith.constant 0 : i32
    %c0_i32_0 = arith.constant 0 : i32
    %c0_i32_1 = arith.constant 0 : i32
    return %arg0, %c0_i32, %c0_i32_0 : i32, i32, i32
  }
  func.func @transform_4(%arg0: i32) -> (i32, i32, i32) {
    %c0_i32 = arith.constant 0 : i32
    %c0_i32_0 = arith.constant 0 : i32
    %c0_i32_1 = arith.constant 0 : i32
    return %arg0, %c0_i32, %c0_i32_0 : i32, i32, i32
  }
  func.func @transform_5(%arg0: i32) -> (i32, i32, i32) {
    %c0_i32 = arith.constant 0 : i32
    %c0_i32_0 = arith.constant 0 : i32
    %c0_i32_1 = arith.constant 0 : i32
    return %arg0, %c0_i32, %c0_i32_0 : i32, i32, i32
  }
  func.func @transform_6(%arg0: i32) -> (i32, i32, i32) {
    %c0_i32 = arith.constant 0 : i32
    %c0_i32_0 = arith.constant 0 : i32
    %c0_i32_1 = arith.constant 0 : i32
    return %arg0, %c0_i32, %c0_i32_0 : i32, i32, i32
  }
  func.func @transform_7(%arg0: i32) -> (i32, i32, i32) {
    %c0_i32 = arith.constant 0 : i32
    %c0_i32_0 = arith.constant 0 : i32
    %c0_i32_1 = arith.constant 0 : i32
    return %arg0, %c0_i32, %c0_i32_0 : i32, i32, i32
  }
  func.func @transform_8(%arg0: i32) -> (i32, i32, i32) {
    %c0_i32 = arith.constant 0 : i32
    %c0_i32_0 = arith.constant 0 : i32
    %c0_i32_1 = arith.constant 0 : i32
    return %arg0, %c0_i32, %c0_i32_0 : i32, i32, i32
  }
  func.func @transform_9(%arg0: i32) -> (i32, i32, i32) {
    %c0_i32 = arith.constant 0 : i32
    %c0_i32_0 = arith.constant 0 : i32
    %c0_i32_1 = arith.constant 0 : i32
    return %arg0, %c0_i32, %c0_i32_0 : i32, i32, i32
  }
  func.func @transform_10(%arg0: i32) -> (i32, i32, i32) {
    %c0_i32 = arith.constant 0 : i32
    %c0_i32_0 = arith.constant 0 : i32
    %c0_i32_1 = arith.constant 0 : i32
    return %arg0, %c0_i32, %c0_i32_0 : i32, i32, i32
  }
  func.func @transform_11(%arg0: i32) -> (i32, i32) {
    %c0_i32 = arith.constant 0 : i32
    %c0_i32_0 = arith.constant 0 : i32
    %c0_i32_1 = arith.constant 0 : i32
    return %c0_i32, %c0_i32_0 : i32, i32
  }
  func.func @transform_12(%arg0: i32) -> (i32, i32) {
    %c0_i32 = arith.constant 0 : i32
    %c0_i32_0 = arith.constant 0 : i32
    %c0_i32_1 = arith.constant 0 : i32
    return %c0_i32, %c0_i32_0 : i32, i32
  }
  func.func @transform_13(%arg0: i32) -> (i32, i32) {
    %c0_i32 = arith.constant 0 : i32
    %c0_i32_0 = arith.constant 0 : i32
    %c0_i32_1 = arith.constant 0 : i32
    return %c0_i32, %c0_i32_0 : i32, i32
  }
}

</mosaic_0001>

<llo_original>
// kernel: tpu_custom_call.1
$region0: #{tpu_custom_call.1}
  #allocation0 [shape = 'u32[]', space=smem, size = 0x4, offset = 0x4, fixed_abs, tag = 'smem constant byte address 0x4 - core index']
  #allocation1 [shape = 'u32[144,128]{1,0:T(1,128)}', space=vmem, size = 0x12000, scoped, tag = 'internal scratch']
  #allocation2 [shape = 'f32[16,32]{1,0:T(8,128)}', space=vmem, size = 0x2000, scoped, tag = 'scratch operand']
  %s0 = inlined_call_operand.vmem [shape: f32[16,16], index: 0, kind: input, shape index: {}]
  %s1 = inlined_call_operand.vmem [shape: f32[16,32], index: 1, kind: input, shape index: {}]
  %s2 = inlined_call_operand.vmem [shape: f32[2,1,32], index: 2, kind: input, shape index: {}]
  %s3 = inlined_call_operand.vmem [shape: f32[2,1,32], index: 3, kind: input, shape index: {}]
  %s4 = inlined_call_operand.vmem [shape: f32[2,32,192], index: 4, kind: input, shape index: {}]
  %s5 = inlined_call_operand.vmem [shape: f32[2,1,32], index: 5, kind: input, shape index: {}]
  %s6 = inlined_call_operand.vmem [shape: f32[2,1,32], index: 6, kind: input, shape index: {}]
  %s7 = inlined_call_operand.vmem [shape: f32[2,32,128], index: 7, kind: input, shape index: {}]
  %s8 = inlined_call_operand.vmem [shape: f32[2,1,128], index: 8, kind: input, shape index: {}]
  %s9 = inlined_call_operand.vmem [shape: f32[2,128,32], index: 9, kind: input, shape index: {}]
  %s10 = inlined_call_operand.vmem [shape: f32[2,1,32], index: 10, kind: input, shape index: {}]
  %s11 = inlined_call_operand.vmem [shape: f32[32,128], index: 11, kind: input, shape index: {}]
  %s12 = inlined_call_operand.vmem [shape: f32[1,128], index: 12, kind: input, shape index: {}]
  %s13 = inlined_call_operand.hbm [shape: f32[16,128], index: 13, kind: output, shape index: {}]
  %s14 = sld [smem:[#allocation0]]
  $region93: #{tpu_custom_call.1} parent=0
    _
  %s16 = ssub.s32 1, %s14
  %s17 = scalar_select 0, %s16, %s14
  $region1: #{tpu_custom_call.1} parent=0
    #allocation3 [shape = 'u8[8192]{0}', space=vmem, size = 0x2000, scoped, tag = 'output window, operand 0, single buffered']
    #allocation4 [shape = 's32[2]{0}', space=sflag, size = 0x8, scoped, tag = 'scoped memory for tpu_custom_call.1']
    %18 = vsyncpa [#allocation4], 0
    loop: start=0, step=1, limit=4
    $region2: #{tpu_custom_call.1} parent=1 // loop_pre_header
      _
    $region3: #{tpu_custom_call.1} parent=1 // loop_header
      %s20 = sphi 0, %s24
      %p21 = scmp.ge.s32.totalorder %s20, 4
      %s28 = sphi 0, %s28
      %s30 = sphi 0, %s28
      %s31 = sphi 0, %s30
      %s45 = sphi 0, %s31
      %s49 = sphi 0, %s49
      %s51 = sphi 0, %s49
      %s52 = sphi 0, %s51
      %s66 = sphi 0, %s52
      %s72 = sphi 0, %s74
      %s75 = sphi 0, %s72
      %s76 = sphi 0, %s75
      %s92 = sphi 0, %s76
      %s98 = sphi 0, %s100
      %s101 = sphi 0, %s98
      %s102 = sphi 0, %s101
      %s118 = sphi 0, %s102
      %s124 = sphi 0, %s126
      %s127 = sphi 0, %s124
      %s128 = sphi 0, %s127
      %s144 = sphi 0, %s128
      %s150 = sphi 0, %s152
      %s153 = sphi 0, %s150
      %s154 = sphi 0, %s153
      %s170 = sphi 0, %s154
      %s176 = sphi 0, %s178
      %s179 = sphi 0, %s176
      %s180 = sphi 0, %s179
      %s196 = sphi 0, %s180
      %s202 = sphi 0, %s204
      %s205 = sphi 0, %s202
      %s206 = sphi 0, %s205
      %s222 = sphi 0, %s206
      %s228 = sphi 0, %s230
      %s231 = sphi 0, %s228
      %s232 = sphi 0, %s231
      %s248 = sphi 0, %s232
      %s254 = sphi 0, %s256
      %s257 = sphi 0, %s254
      %s258 = sphi 0, %s257
      %s274 = sphi 0, %s258
      %s280 = sphi 0, %s282
      %s283 = sphi 0, %s280
      %s284 = sphi 0, %s283
      %s300 = sphi 0, %s284
      %s304 = sphi 0, %s304
      %s306 = sphi 0, %s304
      %s307 = sphi 0, %s306
      %s321 = sphi 0, %s307
      %s325 = sphi 0, %s325
      %s327 = sphi 0, %s325
      %s328 = sphi 0, %s327
      %s342 = sphi 0, %s328
      %s346 = sphi 0, %s346
      %s348 = sphi 0, %s346
      %s349 = sphi 0, %s348
      %s363 = sphi 0, %s349
    $region4: #{tpu_custom_call.1} parent=1 // loop_header_branch
      %23 = sbr.rel (%p21) target = $region8
    $region5: #{tpu_custom_call.1} parent=1 // loop_body
      %s25 = ssub.s32 %s20, 1
      %s26 = ssub.s32 %s20, 2
      %s27 = sadd.s32 %s20, 1
      %s29 = sadd.s32 %s28, 1
      %p32 = scmp.eq.s32.totalorder %s20, 1
      %p33 = scmp.ne.s32.totalorder %s28, %s30
      %p34 = scmp.eq.s32.totalorder %s20, 0
      %p35 = por %p33, %p34
      %p36 = scmp.ne.s32.totalorder %s28, %s30
      %p37 = scmp.eq.s32.totalorder %s25, 1
      %p38 = por %p36, %p37
      %p39 = scmp.ne.s32.totalorder %s30, %s31
      %p40 = scmp.eq.s32.totalorder %s25, 0
      %p41 = por %p39, %p40
      %p42 = scmp.ne.s32.totalorder %s30, %s31
      %p43 = scmp.eq.s32.totalorder %s26, 1
      %p44 = por %p42, %p43
      %p46 = scmp.ne.s32.totalorder %s31, %s45
      %p47 = scmp.eq.s32.totalorder %s26, 0
      %p48 = por %p46, %p47
      %s50 = sadd.s32 %s49, 1
      %p53 = scmp.eq.s32.totalorder %s20, 1
      %p54 = scmp.ne.s32.totalorder %s49, %s51
      %p55 = scmp.eq.s32.totalorder %s20, 0
      %p56 = por %p54, %p55
      %p57 = scmp.ne.s32.totalorder %s49, %s51
      %p58 = scmp.eq.s32.totalorder %s25, 1
      %p59 = por %p57, %p58
      %p60 = scmp.ne.s32.totalorder %s51, %s52
      %p61 = scmp.eq.s32.totalorder %s25, 0
      %p62 = por %p60, %p61
      %p63 = scmp.ne.s32.totalorder %s51, %s52
      %p64 = scmp.eq.s32.totalorder %s26, 1
      %p65 = por %p63, %p64
      %p67 = scmp.ne.s32.totalorder %s52, %s66
      %p68 = scmp.eq.s32.totalorder %s26, 0
      %p69 = por %p67, %p68
      %s70 = ssub.s32 %s20, %s27
      %p71 = scmp.eq.s32.totalorder %s70, 0
      %s73 = sadd.s32 %s72, 1
      %s74 = scalar_select %p71, %s72, %s73
      %p77 = pneg %p71
      %p78 = scmp.eq.s32.totalorder %s20, 1
      %p79 = por %p77, %p78
      %p80 = scmp.ne.s32.totalorder %s72, %s75
      %p81 = scmp.eq.s32.totalorder %s20, 0
      %p82 = por %p80, %p81
      %p83 = scmp.ne.s32.totalorder %s72, %s75
      %p84 = scmp.eq.s32.totalorder %s25, 1
      %p85 = por %p83, %p84
      %p86 = scmp.ne.s32.totalorder %s75, %s76
      %p87 = scmp.eq.s32.totalorder %s25, 0
      %p88 = por %p86, %p87
      %p89 = scmp.ne.s32.totalorder %s75, %s76
      %p90 = scmp.eq.s32.totalorder %s26, 1
      %p91 = por %p89, %p90
      %p93 = scmp.ne.s32.totalorder %s76, %s92
      %p94 = scmp.eq.s32.totalorder %s26, 0
      %p95 = por %p93, %p94
      %s96 = ssub.s32 %s20, %s27
      %p97 = scmp.eq.s32.totalorder %s96, 0
      %s99 = sadd.s32 %s98, 1
      %s100 = scalar_select %p97, %s98, %s99
      %p103 = pneg %p97
      %p104 = scmp.eq.s32.totalorder %s20, 1
      %p105 = por %p103, %p104
      %p106 = scmp.ne.s32.totalorder %s98, %s101
      %p107 = scmp.eq.s32.totalorder %s20, 0
      %p108 = por %p106, %p107
      %p109 = scmp.ne.s32.totalorder %s98, %s101
      %p110 = scmp.eq.s32.totalorder %s25, 1
      %p111 = por %p109, %p110
      %p112 = scmp.ne.s32.totalorder %s101, %s102
      %p113 = scmp.eq.s32.totalorder %s25, 0
      %p114 = por %p112, %p113
      %p115 = scmp.ne.s32.totalorder %s101, %s102
      %p116 = scmp.eq.s32.totalorder %s26, 1
      %p117 = por %p115, %p116
      %p119 = scmp.ne.s32.totalorder %s102, %s118
      %p120 = scmp.eq.s32.totalorder %s26, 0
      %p121 = por %p119, %p120
      %s122 = ssub.s32 %s20, %s27
      %p123 = scmp.eq.s32.totalorder %s122, 0
      %s125 = sadd.s32 %s124, 1
      %s126 = scalar_select %p123, %s124, %s125
      %p129 = pneg %p123
      %p130 = scmp.eq.s32.totalorder %s20, 1
      %p131 = por %p129, %p130
      %p132 = scmp.ne.s32.totalorder %s124, %s127
      %p133 = scmp.eq.s32.totalorder %s20, 0
      %p134 = por %p132, %p133
      %p135 = scmp.ne.s32.totalorder %s124, %s127
      %p136 = scmp.eq.s32.totalorder %s25, 1
      %p137 = por %p135, %p136
      %p138 = scmp.ne.s32.totalorder %s127, %s128
      %p139 = scmp.eq.s32.totalorder %s25, 0
      %p140 = por %p138, %p139
      %p141 = scmp.ne.s32.totalorder %s127, %s128
      %p142 = scmp.eq.s32.totalorder %s26, 1
      %p143 = por %p141, %p142
      %p145 = scmp.ne.s32.totalorder %s128, %s144
      %p146 = scmp.eq.s32.totalorder %s26, 0
      %p147 = por %p145, %p146
      %s148 = ssub.s32 %s20, %s27
      %p149 = scmp.eq.s32.totalorder %s148, 0
      %s151 = sadd.s32 %s150, 1
      %s152 = scalar_select %p149, %s150, %s151
      %p155 = pneg %p149
      %p156 = scmp.eq.s32.totalorder %s20, 1
      %p157 = por %p155, %p156
      %p158 = scmp.ne.s32.totalorder %s150, %s153
      %p159 = scmp.eq.s32.totalorder %s20, 0
      %p160 = por %p158, %p159
      %p161 = scmp.ne.s32.totalorder %s150, %s153
      %p162 = scmp.eq.s32.totalorder %s25, 1
      %p163 = por %p161, %p162
      %p164 = scmp.ne.s32.totalorder %s153, %s154
      %p165 = scmp.eq.s32.totalorder %s25, 0
      %p166 = por %p164, %p165
      %p167 = scmp.ne.s32.totalorder %s153, %s154
      %p168 = scmp.eq.s32.totalorder %s26, 1
      %p169 = por %p167, %p168
      %p171 = scmp.ne.s32.totalorder %s154, %s170
      %p172 = scmp.eq.s32.totalorder %s26, 0
      %p173 = por %p171, %p172
      %s174 = ssub.s32 %s20, %s27
      %p175 = scmp.eq.s32.totalorder %s174, 0
      %s177 = sadd.s32 %s176, 1
      %s178 = scalar_select %p175, %s176, %s177
      %p181 = pneg %p175
      %p182 = scmp.eq.s32.totalorder %s20, 1
      %p183 = por %p181, %p182
      %p184 = scmp.ne.s32.totalorder %s176, %s179
      %p185 = scmp.eq.s32.totalorder %s20, 0
      %p186 = por %p184, %p185
      %p187 = scmp.ne.s32.totalorder %s176, %s179
      %p188 = scmp.eq.s32.totalorder %s25, 1
      %p189 = por %p187, %p188
      %p190 = scmp.ne.s32.totalorder %s179, %s180
      %p191 = scmp.eq.s32.totalorder %s25, 0
      %p192 = por %p190, %p191
      %p193 = scmp.ne.s32.totalorder %s179, %s180
      %p194 = scmp.eq.s32.totalorder %s26, 1
      %p195 = por %p193, %p194
      %p197 = scmp.ne.s32.totalorder %s180, %s196
      %p198 = scmp.eq.s32.totalorder %s26, 0
      %p199 = por %p197, %p198
      %s200 = ssub.s32 %s20, %s27
      %p201 = scmp.eq.s32.totalorder %s200, 0
      %s203 = sadd.s32 %s202, 1
      %s204 = scalar_select %p201, %s202, %s203
      %p207 = pneg %p201
      %p208 = scmp.eq.s32.totalorder %s20, 1
      %p209 = por %p207, %p208
      %p210 = scmp.ne.s32.totalorder %s202, %s205
      %p211 = scmp.eq.s32.totalorder %s20, 0
      %p212 = por %p210, %p211
      %p213 = scmp.ne.s32.totalorder %s202, %s205
      %p214 = scmp.eq.s32.totalorder %s25, 1
      %p215 = por %p213, %p214
      %p216 = scmp.ne.s32.totalorder %s205, %s206
      %p217 = scmp.eq.s32.totalorder %s25, 0
      %p218 = por %p216, %p217
      %p219 = scmp.ne.s32.totalorder %s205, %s206
      %p220 = scmp.eq.s32.totalorder %s26, 1
      %p221 = por %p219, %p220
      %p223 = scmp.ne.s32.totalorder %s206, %s222
      %p224 = scmp.eq.s32.totalorder %s26, 0
      %p225 = por %p223, %p224
      %s226 = ssub.s32 %s20, %s27
      %p227 = scmp.eq.s32.totalorder %s226, 0
      %s229 = sadd.s32 %s228, 1
      %s230 = scalar_select %p227, %s228, %s229
      %p233 = pneg %p227
      %p234 = scmp.eq.s32.totalorder %s20, 1
      %p235 = por %p233, %p234
      %p236 = scmp.ne.s32.totalorder %s228, %s231
      %p237 = scmp.eq.s32.totalorder %s20, 0
      %p238 = por %p236, %p237
      %p239 = scmp.ne.s32.totalorder %s228, %s231
      %p240 = scmp.eq.s32.totalorder %s25, 1
      %p241 = por %p239, %p240
      %p242 = scmp.ne.s32.totalorder %s231, %s232
      %p243 = scmp.eq.s32.totalorder %s25, 0
      %p244 = por %p242, %p243
      %p245 = scmp.ne.s32.totalorder %s231, %s232
      %p246 = scmp.eq.s32.totalorder %s26, 1
      %p247 = por %p245, %p246
      %p249 = scmp.ne.s32.totalorder %s232, %s248
      %p250 = scmp.eq.s32.totalorder %s26, 0
      %p251 = por %p249, %p250
      %s252 = ssub.s32 %s20, %s27
      %p253 = scmp.eq.s32.totalorder %s252, 0
      %s255 = sadd.s32 %s254, 1
      %s256 = scalar_select %p253, %s254, %s255
      %p259 = pneg %p253
      %p260 = scmp.eq.s32.totalorder %s20, 1
      %p261 = por %p259, %p260
      %p262 = scmp.ne.s32.totalorder %s254, %s257
      %p263 = scmp.eq.s32.totalorder %s20, 0
      %p264 = por %p262, %p263
      %p265 = scmp.ne.s32.totalorder %s254, %s257
      %p266 = scmp.eq.s32.totalorder %s25, 1
      %p267 = por %p265, %p266
      %p268 = scmp.ne.s32.totalorder %s257, %s258
      %p269 = scmp.eq.s32.totalorder %s25, 0
      %p270 = por %p268, %p269
      %p271 = scmp.ne.s32.totalorder %s257, %s258
      %p272 = scmp.eq.s32.totalorder %s26, 1
      %p273 = por %p271, %p272
      %p275 = scmp.ne.s32.totalorder %s258, %s274
      %p276 = scmp.eq.s32.totalorder %s26, 0
      %p277 = por %p275, %p276
      %s278 = ssub.s32 %s20, %s27
      %p279 = scmp.eq.s32.totalorder %s278, 0
      %s281 = sadd.s32 %s280, 1
      %s282 = scalar_select %p279, %s280, %s281
      %p285 = pneg %p279
      %p286 = scmp.eq.s32.totalorder %s20, 1
      %p287 = por %p285, %p286
      %p288 = scmp.ne.s32.totalorder %s280, %s283
      %p289 = scmp.eq.s32.totalorder %s20, 0
      %p290 = por %p288, %p289
      %p291 = scmp.ne.s32.totalorder %s280, %s283
      %p292 = scmp.eq.s32.totalorder %s25, 1
      %p293 = por %p291, %p292
      %p294 = scmp.ne.s32.totalorder %s283, %s284
      %p295 = scmp.eq.s32.totalorder %s25, 0
      %p296 = por %p294, %p295
      %p297 = scmp.ne.s32.totalorder %s283, %s284
      %p298 = scmp.eq.s32.totalorder %s26, 1
      %p299 = por %p297, %p298
      %p301 = scmp.ne.s32.totalorder %s284, %s300
      %p302 = scmp.eq.s32.totalorder %s26, 0
      %p303 = por %p301, %p302
      %s305 = sadd.s32 %s304, 1
      %p308 = scmp.eq.s32.totalorder %s20, 1
      %p309 = scmp.ne.s32.totalorder %s304, %s306
      %p310 = scmp.eq.s32.totalorder %s20, 0
      %p311 = por %p309, %p310
      %p312 = scmp.ne.s32.totalorder %s304, %s306
      %p313 = scmp.eq.s32.totalorder %s25, 1
      %p314 = por %p312, %p313
      %p315 = scmp.ne.s32.totalorder %s306, %s307
      %p316 = scmp.eq.s32.totalorder %s25, 0
      %p317 = por %p315, %p316
      %p318 = scmp.ne.s32.totalorder %s306, %s307
      %p319 = scmp.eq.s32.totalorder %s26, 1
      %p320 = por %p318, %p319
      %p322 = scmp.ne.s32.totalorder %s307, %s321
      %p323 = scmp.eq.s32.totalorder %s26, 0
      %p324 = por %p322, %p323
      %s326 = sadd.s32 %s325, 1
      %p329 = scmp.eq.s32.totalorder %s20, 1
      %p330 = scmp.ne.s32.totalorder %s325, %s327
      %p331 = scmp.eq.s32.totalorder %s20, 0
      %p332 = por %p330, %p331
      %p333 = scmp.ne.s32.totalorder %s325, %s327
      %p334 = scmp.eq.s32.totalorder %s25, 1
      %p335 = por %p333, %p334
      %p336 = scmp.ne.s32.totalorder %s327, %s328
      %p337 = scmp.eq.s32.totalorder %s25, 0
      %p338 = por %p336, %p337
      %p339 = scmp.ne.s32.totalorder %s327, %s328
      %p340 = scmp.eq.s32.totalorder %s26, 1
      %p341 = por %p339, %p340
      %p343 = scmp.ne.s32.totalorder %s328, %s342
      %p344 = scmp.eq.s32.totalorder %s26, 0
      %p345 = por %p343, %p344
      %s347 = sadd.s32 %s346, 1
      %p350 = scmp.eq.s32.totalorder %s20, 1
      %p351 = scmp.ne.s32.totalorder %s346, %s348
      %p352 = scmp.eq.s32.totalorder %s20, 0
      %p353 = por %p351, %p352
      %p354 = scmp.ne.s32.totalorder %s346, %s348
      %p355 = scmp.eq.s32.totalorder %s25, 1
      %p356 = por %p354, %p355
      %p357 = scmp.ne.s32.totalorder %s348, %s349
      %p358 = scmp.eq.s32.totalorder %s25, 0
      %p359 = por %p357, %p358
      %p360 = scmp.ne.s32.totalorder %s348, %s349
      %p361 = scmp.eq.s32.totalorder %s26, 1
      %p362 = por %p360, %p361
      %p364 = scmp.ne.s32.totalorder %s349, %s363
      %p365 = scmp.eq.s32.totalorder %s26, 0
      %p366 = por %p364, %p365
      %p367 = scmp.le.s32.totalorder 1, %s20
      %p368 = scmp.lt.s32.totalorder %s20, 3
      %p369 = pnand %p367, %p368
      %p370 = pneg %p369
      // Predicated region
      $region9: #{tpu_custom_call.1} parent=5 // pred_check
        _
      $region10: #{tpu_custom_call.1} parent=5 // pred_check_branch
        %372 = sbr.rel (%p369) target = $region12
      $region11: #{tpu_custom_call.1} parent=5 // pred_region
        %s373 = ssub.s32 %s20, 1
        // Predicated region
        $region13: #{tpu_custom_call.1} parent=11 // pred_check
          %p374 = pneg %p41
        $region14: #{tpu_custom_call.1} parent=11 // pred_check_branch
          %376 = sbr.rel (%p374) target = $region16
        $region15: #{tpu_custom_call.1} parent=11 // pred_region
          _
        $region16: #{tpu_custom_call.1} parent=11 // pred_fallthru
          _
        // Predicated region
        $region17: #{tpu_custom_call.1} parent=11 // pred_check
          %p377 = pneg %p62
        $region18: #{tpu_custom_call.1} parent=11 // pred_check_branch
          %379 = sbr.rel (%p377) target = $region20
        $region19: #{tpu_custom_call.1} parent=11 // pred_region
          _
        $region20: #{tpu_custom_call.1} parent=11 // pred_fallthru
          _
        // Predicated region
        $region21: #{tpu_custom_call.1} parent=11 // pred_check
          %p380 = pneg %p317
        $region22: #{tpu_custom_call.1} parent=11 // pred_check_branch
          %382 = sbr.rel (%p380) target = $region24
        $region23: #{tpu_custom_call.1} parent=11 // pred_region
          _
        $region24: #{tpu_custom_call.1} parent=11 // pred_fallthru
          _
        // Predicated region
        $region25: #{tpu_custom_call.1} parent=11 // pred_check
          %p383 = pneg %p338
        $region26: #{tpu_custom_call.1} parent=11 // pred_check_branch
          %385 = sbr.rel (%p383) target = $region28
        $region27: #{tpu_custom_call.1} parent=11 // pred_region
          _
        $region28: #{tpu_custom_call.1} parent=11 // pred_fallthru
          _
      $region12: #{tpu_custom_call.1} parent=5 // pred_fallthru
        _
      %p386 = scmp.lt.s32.totalorder %s20, 2
      // Predicated region
      $region29: #{tpu_custom_call.1} parent=5 // pred_check
        %p387 = pneg %p386
      $region30: #{tpu_custom_call.1} parent=5 // pred_check_branch
        %389 = sbr.rel (%p387) target = $region32
      $region31: #{tpu_custom_call.1} parent=5 // pred_region
        // Predicated region
        $region33: #{tpu_custom_call.1} parent=31 // pred_check
          %p390 = pneg %p82
        $region34: #{tpu_custom_call.1} parent=31 // pred_check_branch
          %392 = sbr.rel (%p390) target = $region36
        $region35: #{tpu_custom_call.1} parent=31 // pred_region
          %p393 = scmp.lt.s32.totalorder %s20, 1
          %s394 = scalar_select %p393, %s20, 1
          %s395 = scalar_lea.vmem %s2, %s394
        $region36: #{tpu_custom_call.1} parent=31 // pred_fallthru
          _
        // Predicated region
        $region37: #{tpu_custom_call.1} parent=31 // pred_check
          %p396 = pneg %p108
        $region38: #{tpu_custom_call.1} parent=31 // pred_check_branch
          %398 = sbr.rel (%p396) target = $region40
        $region39: #{tpu_custom_call.1} parent=31 // pred_region
          %p399 = scmp.lt.s32.totalorder %s20, 1
          %s400 = scalar_select %p399, %s20, 1
          %s401 = scalar_lea.vmem %s3, %s400
        $region40: #{tpu_custom_call.1} parent=31 // pred_fallthru
          _
        // Predicated region
        $region41: #{tpu_custom_call.1} parent=31 // pred_check
          %p402 = pneg %p134
        $region42: #{tpu_custom_call.1} parent=31 // pred_check_branch
          %404 = sbr.rel (%p402) target = $region44
        $region43: #{tpu_custom_call.1} parent=31 // pred_region
          %p405 = scmp.lt.s32.totalorder %s20, 1
          %s406 = scalar_select %p405, %s20, 1
          %s407 = smul.addr %s406, 8
          %s408 = smul.addr %s407, 8
          %s409 = scalar_lea.vmem %s4, %s408
        $region44: #{tpu_custom_call.1} parent=31 // pred_fallthru
          _
        // Predicated region
        $region45: #{tpu_custom_call.1} parent=31 // pred_check
          %p410 = pneg %p160
        $region46: #{tpu_custom_call.1} parent=31 // pred_check_branch
          %412 = sbr.rel (%p410) target = $region48
        $region47: #{tpu_custom_call.1} parent=31 // pred_region
          %p413 = scmp.lt.s32.totalorder %s20, 1
          %s414 = scalar_select %p413, %s20, 1
          %s415 = scalar_lea.vmem %s5, %s414
        $region48: #{tpu_custom_call.1} parent=31 // pred_fallthru
          _
        // Predicated region
        $region49: #{tpu_custom_call.1} parent=31 // pred_check
          %p416 = pneg %p186
        $region50: #{tpu_custom_call.1} parent=31 // pred_check_branch
          %418 = sbr.rel (%p416) target = $region52
        $region51: #{tpu_custom_call.1} parent=31 // pred_region
          %p419 = scmp.lt.s32.totalorder %s20, 1
          %s420 = scalar_select %p419, %s20, 1
          %s421 = scalar_lea.vmem %s6, %s420
        $region52: #{tpu_custom_call.1} parent=31 // pred_fallthru
          _
        // Predicated region
        $region53: #{tpu_custom_call.1} parent=31 // pred_check
          %p422 = pneg %p212
        $region54: #{tpu_custom_call.1} parent=31 // pred_check_branch
          %424 = sbr.rel (%p422) target = $region56
        $region55: #{tpu_custom_call.1} parent=31 // pred_region
          %p425 = scmp.lt.s32.totalorder %s20, 1
          %s426 = scalar_select %p425, %s20, 1
          %s427 = smul.addr %s426, 4
          %s428 = smul.addr %s427, 8
          %s429 = scalar_lea.vmem %s7, %s428
        $region56: #{tpu_custom_call.1} parent=31 // pred_fallthru
          _
        // Predicated region
        $region57: #{tpu_custom_call.1} parent=31 // pred_check
          %p430 = pneg %p238
        $region58: #{tpu_custom_call.1} parent=31 // pred_check_branch
          %432 = sbr.rel (%p430) target = $region60
        $region59: #{tpu_custom_call.1} parent=31 // pred_region
          %p433 = scmp.lt.s32.totalorder %s20, 1
          %s434 = scalar_select %p433, %s20, 1
          %s435 = scalar_lea.vmem %s8, %s434
        $region60: #{tpu_custom_call.1} parent=31 // pred_fallthru
          _
        // Predicated region
        $region61: #{tpu_custom_call.1} parent=31 // pred_check
          %p436 = pneg %p264
        $region62: #{tpu_custom_call.1} parent=31 // pred_check_branch
          %438 = sbr.rel (%p436) target = $region64
        $region63: #{tpu_custom_call.1} parent=31 // pred_region
          %p439 = scmp.lt.s32.totalorder %s20, 1
          %s440 = scalar_select %p439, %s20, 1
          %s441 = smul.addr %s440, 16
          %s442 = smul.addr %s441, 8
          %s443 = scalar_lea.vmem %s9, %s442
        $region64: #{tpu_custom_call.1} parent=31 // pred_fallthru
          _
        // Predicated region
        $region65: #{tpu_custom_call.1} parent=31 // pred_check
          %p444 = pneg %p290
        $region66: #{tpu_custom_call.1} parent=31 // pred_check_branch
          %446 = sbr.rel (%p444) target = $region68
        $region67: #{tpu_custom_call.1} parent=31 // pred_region
          %p447 = scmp.lt.s32.totalorder %s20, 1
          %s448 = scalar_select %p447, %s20, 1
          %s449 = scalar_lea.vmem %s10, %s448
        $region68: #{tpu_custom_call.1} parent=31 // pred_fallthru
          _
      $region32: #{tpu_custom_call.1} parent=5 // pred_fallthru
        _
      %p450 = scmp.le.s32.totalorder 1, %s20
      %p451 = scmp.lt.s32.totalorder %s20, 3
      %p452 = pnand %p450, %p451
      %p453 = pneg %p452
      // Predicated region
      $region69: #{tpu_custom_call.1} parent=5 // pred_check
        _
      $region70: #{tpu_custom_call.1} parent=5 // pred_check_branch
        %455 = sbr.rel (%p452) target = $region72
      $region71: #{tpu_custom_call.1} parent=5 // pred_region
        %s456 = ssub.s32 %s20, 1
        %p457 = pneg %p41
        %p458 = pneg %p38
        %p459 = pneg %p62
        %p460 = pneg %p59
        %p461 = scmp.lt.s32.totalorder %s25, 1
        %s462 = scalar_select %p461, %s25, 1
        %s463 = scalar_lea.vmem %s2, %s462
        %p464 = pneg %p88
        %p465 = pneg %p85
        %p466 = scmp.lt.s32.totalorder %s25, 1
        %s467 = scalar_select %p466, %s25, 1
        %s468 = scalar_lea.vmem %s3, %s467
        %p469 = pneg %p114
        %p470 = pneg %p111
        %p471 = scmp.lt.s32.totalorder %s25, 1
        %s472 = scalar_select %p471, %s25, 1
        %s473 = smul.addr %s472, 8
        %s474 = smul.addr %s473, 8
        %s475 = scalar_lea.vmem %s4, %s474
        %p476 = pneg %p140
        %p477 = pneg %p137
        %p478 = scmp.lt.s32.totalorder %s25, 1
        %s479 = scalar_select %p478, %s25, 1
        %s480 = scalar_lea.vmem %s5, %s479
        %p481 = pneg %p166
        %p482 = pneg %p163
        %p483 = scmp.lt.s32.totalorder %s25, 1
        %s484 = scalar_select %p483, %s25, 1
        %s485 = scalar_lea.vmem %s6, %s484
        %p486 = pneg %p192
        %p487 = pneg %p189
        %p488 = scmp.lt.s32.totalorder %s25, 1
        %s489 = scalar_select %p488, %s25, 1
        %s490 = smul.addr %s489, 4
        %s491 = smul.addr %s490, 8
        %s492 = scalar_lea.vmem %s7, %s491
        %p493 = pneg %p218
        %p494 = pneg %p215
        %p495 = scmp.lt.s32.totalorder %s25, 1
        %s496 = scalar_select %p495, %s25, 1
        %s497 = scalar_lea.vmem %s8, %s496
        %p498 = pneg %p244
        %p499 = pneg %p241
        %p500 = scmp.lt.s32.totalorder %s25, 1
        %s501 = scalar_select %p500, %s25, 1
        %s502 = smul.addr %s501, 16
        %s503 = smul.addr %s502, 8
        %s504 = scalar_lea.vmem %s9, %s503
        %p505 = pneg %p270
        %p506 = pneg %p267
        %p507 = scmp.lt.s32.totalorder %s25, 1
        %s508 = scalar_select %p507, %s25, 1
        %s509 = scalar_lea.vmem %s10, %s508
        %p510 = pneg %p296
        %p511 = pneg %p293
        %p512 = pneg %p317
        %p513 = pneg %p314
        %p514 = pneg %p338
        %p515 = pneg %p335
        %p516 = pneg %p359
        %p517 = pneg %p356
        %p518 = scmp.lt.s32.totalorder %s25, 1
        %s519 = scalar_select %p518, %s25, 1
        %s520 = scalar_lea.vmem %s2, %s519
        %p521 = scmp.lt.s32.totalorder %s25, 1
        %s522 = scalar_select %p521, %s25, 1
        %s523 = scalar_lea.vmem %s3, %s522
        %p524 = scmp.lt.s32.totalorder %s25, 1
        %s525 = scalar_select %p524, %s25, 1
        %s526 = smul.addr %s525, 8
        %s527 = smul.addr %s526, 8
        %s528 = scalar_lea.vmem %s4, %s527
        %p529 = scmp.lt.s32.totalorder %s25, 1
        %s530 = scalar_select %p529, %s25, 1
        %s531 = scalar_lea.vmem %s5, %s530
        %p532 = scmp.lt.s32.totalorder %s25, 1
        %s533 = scalar_select %p532, %s25, 1
        %s534 = scalar_lea.vmem %s6, %s533
        %p535 = scmp.lt.s32.totalorder %s25, 1
        %s536 = scalar_select %p535, %s25, 1
        %s537 = smul.addr %s536, 4
        %s538 = smul.addr %s537, 8
        %s539 = scalar_lea.vmem %s7, %s538
        %p540 = scmp.lt.s32.totalorder %s25, 1
        %s541 = scalar_select %p540, %s25, 1
        %s542 = scalar_lea.vmem %s8, %s541
        %p543 = scmp.lt.s32.totalorder %s25, 1
        %s544 = scalar_select %p543, %s25, 1
        %s545 = smul.addr %s544, 16
        %s546 = smul.addr %s545, 8
        %s547 = scalar_lea.vmem %s9, %s546
        %p548 = scmp.lt.s32.totalorder %s25, 1
        %s549 = scalar_select %p548, %s25, 1
        %s550 = scalar_lea.vmem %s10, %s549
        %p551 = scmp.eq.s32.totalorder %s25, 0
        // Predicated region
        $region73: #{tpu_custom_call.1} parent=71 // pred_check
          %p552 = pneg %p551
        $region74: #{tpu_custom_call.1} parent=71 // pred_check_branch
          %554 = sbr.rel (%p552) target = $region76
        $region75: #{tpu_custom_call.1} parent=71 // pred_region
          %v555 = vld [vmem:[%s1] sm:$0xff]
          %v556 = vld [vmem:[%s1 + $0x8] sm:$0xff]
          %vm557 = vcmask 261120
          %558 = vst.msk [vmem:[#allocation2] sm:$0xff] %vm557, %v555
          %559 = vst.msk [vmem:[#allocation2 + $0x8] sm:$0xff] %vm557, %v556
        $region76: #{tpu_custom_call.1} parent=71 // pred_fallthru
          _
        %v560 = vld [vmem:[#allocation2] sm:$0xff]
        %v561 = vld [vmem:[#allocation2 + $0x8] sm:$0xff]
        %v562 = vld [vmem:[%s520] sm:$0x1]
        %v563 = vld [vmem:[%s523] sm:$0x1]
        %vm564 = vcmask 261120
        %v565 = vsel %vm564, %v560, 0.0
        %566 = vadd.xlane.f32.xlu0 %v565
        %v567 = vpop.xlane.xlu0 %566
        %v568 = vsel %vm564, %v561, 0.0
        %569 = vadd.xlane.f32.xlu0 %v568
        %v570 = vpop.xlane.xlu0 %569
        %v571 = vrcp.pop 32.0
        %v572 = vmul.f32 %v567, %v571
        %v573 = vmul.f32 %v570, %v571
        %v574 = vsub.f32 %v560, %v572
        %v575 = vsub.f32 %v561, %v573
        %v576 = vmul.f32 %v574, %v574
        %v577 = vmul.f32 %v575, %v575
        %v578 = vsel %vm564, %v576, 0.0
        %579 = vadd.xlane.f32.xlu0 %v578
        %v580 = vpop.xlane.xlu0 %579
        %v581 = vsel %vm564, %v577, 0.0
        %582 = vadd.xlane.f32.xlu0 %v581
        %v583 = vpop.xlane.xlu0 %582
        %v584 = vmul.f32 %v580, %v571
        %v585 = vmul.f32 %v583, %v571
        %v586 = vadd.f32 %v584, 1e-05
        %v587 = vadd.f32 %v585, 1e-05
        %v588 = vrsqrt.pop %v586
        %v589 = vrsqrt.pop %v587
        %v590 = vmul.f32 %v574, %v588
        %v591 = vmul.f32 %v575, %v589
        %v593 = vlaneseq
        %v594 = vshrl.u32 %v593, 7
        %v595 = vsub.s32 0, %v594
        %v596 = vrot.slane %v562, %v595
        %v598 = vmul.f32 %v590, %v596
        %v599 = vmul.f32 %v591, %v596
        %v601 = vlaneseq
        %v602 = vshrl.u32 %v601, 7
        %v603 = vsub.s32 0, %v602
        %v604 = vrot.slane %v563, %v603
        %v606 = vadd.f32 %v598, %v604
        %v607 = vadd.f32 %v599, %v604
        %v608 = vld [vmem:[%s528] sm:$0xff]
        %v609 = vld [vmem:[%s528 + $0x8] sm:$0xff]
        %v610 = vld [vmem:[%s528 + $0x10] sm:$0xff]
        %v611 = vld [vmem:[%s528 + $0x18] sm:$0xff]
        %v612 = vld [vmem:[%s528 + $0x20] sm:$0xff]
        %v613 = vld [vmem:[%s528 + $0x28] sm:$0xff]
        %v614 = vld [vmem:[%s528 + $0x30] sm:$0xff]
        %v615 = vld [vmem:[%s528 + $0x38] sm:$0xff]
        %v617 = vsel %vm564, %v606, 0
        %v620 = vsel %vm564, %v607, 0
        %622 = vmatprep.subr.mxu0 %v609
        %623 = vmatpush1.msra.mxu0 %v608
        %624 = vmatprep.subr.mxu0 %v611
        %625 = vmatpush1.msra.mxu0 %v610
        %626 = vmatprep.subr.mxu0 %v613
        %627 = vmatpush1.msra.mxu0 %v612
        %628 = vmatprep.subr.mxu0 %v615
        %629 = vmatpush1.msra.mxu0 %v614
        %630 = vmatprep.subr.mxu0 0.0
        %631 = vmatpush1.msra.mxu0 0.0
        %632 = vmatprep.subr.mxu0 0.0
        %633 = vmatpush1.msra.mxu0 0.0
        %634 = vmatprep.subr.mxu0 0.0
        %635 = vmatpush1.msra.mxu0 0.0
        %636 = vmatprep.subr.mxu0 0.0
        %637 = vmatpush1.msra.mxu0 0.0
        %638 = vmatprep.subr.mxu0 0.0
        %639 = vmatpush1.msra.mxu0 0.0
        %640 = vmatprep.subr.mxu0 0.0
        %641 = vmatpush1.msra.mxu0 0.0
        %642 = vmatprep.subr.mxu0 0.0
        %643 = vmatpush1.msra.mxu0 0.0
        %644 = vmatprep.subr.mxu0 0.0
        %645 = vmatpush1.msra.mxu0 0.0
        %646 = vmatprep.subr.mxu0 0.0
        %647 = vmatpush1.msra.mxu0 0.0
        %648 = vmatprep.subr.mxu0 0.0
        %649 = vmatpush1.msra.mxu0 0.0
        %650 = vmatprep.subr.mxu0 0.0
        %651 = vmatpush1.msra.mxu0 0.0
        %652 = vmatprep.subr.mxu0 0.0
        %653 = vmatpush1.msra.mxu0 0.0
        %654 = vmatprep.subr.mxu0 0.0
        %655 = vmatpush1.msra.mxu0 0.0
        %656 = vmatprep.subr.mxu0 0.0
        %657 = vmatpush1.msra.mxu0 0.0
        %658 = vmatprep.subr.mxu0 0.0
        %659 = vmatpush1.msra.mxu0 0.0
        %660 = vmatprep.subr.mxu0 0.0
        %661 = vmatpush1.msra.mxu0 0.0
        %662 = vmatprep.subr.mxu0 0.0
        %663 = vmatpush1.msra.mxu0 0.0
        %664 = vmatprep.subr.mxu0 0.0
        %665 = vmatpush1.msra.mxu0 0.0
        %666 = vmatprep.subr.mxu0 0.0
        %667 = vmatpush1.msra.mxu0 0.0
        %668 = vmatprep.subr.mxu0 0.0
        %669 = vmatpush1.msra.mxu0 0.0
        %670 = vmatprep.subr.mxu0 0.0
        %671 = vmatpush1.msra.mxu0 0.0
        %672 = vmatprep.subr.mxu0 0.0
        %673 = vmatpush1.msra.mxu0 0.0
        %674 = vmatprep.subr.mxu0 0.0
        %675 = vmatpush1.msra.mxu0 0.0
        %676 = vmatprep.subr.mxu0 0.0
        %677 = vmatpush1.msra.mxu0 0.0
        %678 = vmatprep.subr.mxu0 0.0
        %679 = vmatpush1.msra.mxu0 0.0
        %680 = vmatprep.subr.mxu0 0.0
        %681 = vmatpush1.msra.mxu0 0.0
        %682 = vmatprep.subr.mxu0 0.0
        %683 = vmatpush1.msra.mxu0 0.0
        %684 = vmatprep.subr.mxu0 0.0
        %685 = vmatpush1.msra.mxu0 0.0
        %686 = vmatprep.mubr.f32.mxu0 0.0
        %687 = vmatmul.mubr.f32.gmra.mrb[0].mxu0 %v617
        %v688 = vpop.f32.mrb[0].mxu0
        %v689 = vadd.f32 0.0, %v688
        %v690 = vpop.f32.mrb[0].mxu0
        %v691 = vadd.f32 0.0, %v690
        %692 = vmatprep.mubr.f32.mxu0 0.0
        %693 = vmatmul.mubr.f32.gmra.mrb[0].mxu0 %v620
        %v694 = vpop.f32.mrb[0].mxu0
        %v695 = vadd.f32 0.0, %v694
        %v696 = vpop.f32.mrb[0].mxu0
        %v697 = vadd.f32 0.0, %v696
        %698 = vdwg.mxu0
        %701 = vrot.lane.b32.xlu0 %v689, 96
        %v702 = vpop.permute.xlu0 %701
        %703 = vrot.lane.b32.xlu0 %v695, 96
        %v704 = vpop.permute.xlu0 %703
        %707 = vrot.lane.b32.xlu0 %v691, 96
        %v708 = vpop.permute.xlu0 %707
        %709 = vrot.lane.b32.xlu0 %v697, 96
        %v710 = vpop.permute.xlu0 %709
        %713 = vrot.lane.b32.xlu0 %v689, 64
        %v714 = vpop.permute.xlu0 %713
        %715 = vrot.lane.b32.xlu0 %v695, 64
        %v716 = vpop.permute.xlu0 %715
        %v717 = vsel %vm564, %v689, 0
        %v719 = vsel %vm564, %v695, 0
        %v721 = vsel %vm564, %v714, 0
        %v723 = vsel %vm564, %v716, 0
        %725 = vmatprep.subr.mxu0 0.0
        %726 = vmatpush1.xpose.msra.mxu0 %v721
        %727 = vmatprep.subr.mxu0 0.0
        %728 = vmatpush1.xpose.msra.mxu0 %v723
        %729 = vmatprep.subr.mxu0 0.0
        %730 = vmatpush1.xpose.msra.mxu0 0.0
        %731 = vmatprep.subr.mxu0 0.0
        %732 = vmatpush1.xpose.msra.mxu0 0.0
        %733 = vmatprep.subr.mxu0 0.0
        %734 = vmatpush1.xpose.msra.mxu0 0.0
        %735 = vmatprep.subr.mxu0 0.0
        %736 = vmatpush1.xpose.msra.mxu0 0.0
        %737 = vmatprep.subr.mxu0 0.0
        %738 = vmatpush1.xpose.msra.mxu0 0.0
        %739 = vmatprep.subr.mxu0 0.0
        %740 = vmatpush1.xpose.msra.mxu0 0.0
        %741 = vmatprep.subr.mxu0 0.0
        %742 = vmatpush1.xpose.msra.mxu0 0.0
        %743 = vmatprep.subr.mxu0 0.0
        %744 = vmatpush1.xpose.msra.mxu0 0.0
        %745 = vmatprep.subr.mxu0 0.0
        %746 = vmatpush1.xpose.msra.mxu0 0.0
        %747 = vmatprep.subr.mxu0 0.0
        %748 = vmatpush1.xpose.msra.mxu0 0.0
        %749 = vmatprep.subr.mxu0 0.0
        %750 = vmatpush1.xpose.msra.mxu0 0.0
        %751 = vmatprep.subr.mxu0 0.0
        %752 = vmatpush1.xpose.msra.mxu0 0.0
        %753 = vmatprep.subr.mxu0 0.0
        %754 = vmatpush1.xpose.msra.mxu0 0.0
        %755 = vmatprep.subr.mxu0 0.0
        %756 = vmatpush1.xpose.msra.mxu0 0.0
        %757 = vmatprep.subr.mxu0 0.0
        %758 = vmatpush1.xpose.msra.mxu0 0.0
        %759 = vmatprep.subr.mxu0 0.0
        %760 = vmatpush1.xpose.msra.mxu0 0.0
        %761 = vmatprep.subr.mxu0 0.0
        %762 = vmatpush1.xpose.msra.mxu0 0.0
        %763 = vmatprep.subr.mxu0 0.0
        %764 = vmatpush1.xpose.msra.mxu0 0.0
        %765 = vmatprep.subr.mxu0 0.0
        %766 = vmatpush1.xpose.msra.mxu0 0.0
        %767 = vmatprep.subr.mxu0 0.0
        %768 = vmatpush1.xpose.msra.mxu0 0.0
        %769 = vmatprep.subr.mxu0 0.0
        %770 = vmatpush1.xpose.msra.mxu0 0.0
        %771 = vmatprep.subr.mxu0 0.0
        %772 = vmatpush1.xpose.msra.mxu0 0.0
        %773 = vmatprep.subr.mxu0 0.0
        %774 = vmatpush1.xpose.msra.mxu0 0.0
        %775 = vmatprep.subr.mxu0 0.0
        %776 = vmatpush1.xpose.msra.mxu0 0.0
        %777 = vmatprep.subr.mxu0 0.0
        %778 = vmatpush1.xpose.msra.mxu0 0.0
        %779 = vmatprep.subr.mxu0 0.0
        %780 = vmatpush1.xpose.msra.mxu0 0.0
        %781 = vmatprep.subr.mxu0 0.0
        %782 = vmatpush1.xpose.msra.mxu0 0.0
        %783 = vmatprep.subr.mxu0 0.0
        %784 = vmatpush1.xpose.msra.mxu0 0.0
        %785 = vmatprep.subr.mxu0 0.0
        %786 = vmatpush1.xpose.msra.mxu0 0.0
        %787 = vmatprep.subr.mxu0 0.0
        %788 = vmatpush1.xpose.msra.mxu0 0.0
        %789 = vmatprep.mubr.f32.mxu0 0.0
        %790 = vmatmul.mubr.f32.gmra.mrb[0].mxu0 %v717
        %v791 = vpop.f32.mrb[0].mxu0
        %v792 = vadd.f32 0.0, %v791
        %v793 = vpop.f32.mrb[0].mxu0
        %794 = vmatprep.mubr.f32.mxu0 0.0
        %795 = vmatmul.mubr.f32.gmra.mrb[0].mxu0 %v719
        %v796 = vpop.f32.mrb[0].mxu0
        %v797 = vadd.f32 0.0, %v796
        %v798 = vpop.f32.mrb[0].mxu0
        %799 = vdwg.mxu0
        %800 = vrot.lane.b32.xlu0 %v702, 64
        %v801 = vpop.permute.xlu0 %800
        %802 = vrot.lane.b32.xlu0 %v704, 64
        %v803 = vpop.permute.xlu0 %802
        %v804 = vsel %vm564, %v702, 0
        %v806 = vsel %vm564, %v704, 0
        %v808 = vsel %vm564, %v801, 0
        %v810 = vsel %vm564, %v803, 0
        %812 = vmatprep.subr.mxu0 0.0
        %813 = vmatpush1.xpose.msra.mxu0 %v808
        %814 = vmatprep.subr.mxu0 0.0
        %815 = vmatpush1.xpose.msra.mxu0 %v810
        %816 = vmatprep.subr.mxu0 0.0
        %817 = vmatpush1.xpose.msra.mxu0 0.0
        %818 = vmatprep.subr.mxu0 0.0
        %819 = vmatpush1.xpose.msra.mxu0 0.0
        %820 = vmatprep.subr.mxu0 0.0
        %821 = vmatpush1.xpose.msra.mxu0 0.0
        %822 = vmatprep.subr.mxu0 0.0
        %823 = vmatpush1.xpose.msra.mxu0 0.0
        %824 = vmatprep.subr.mxu0 0.0
        %825 = vmatpush1.xpose.msra.mxu0 0.0
        %826 = vmatprep.subr.mxu0 0.0
        %827 = vmatpush1.xpose.msra.mxu0 0.0
        %828 = vmatprep.subr.mxu0 0.0
        %829 = vmatpush1.xpose.msra.mxu0 0.0
        %830 = vmatprep.subr.mxu0 0.0
        %831 = vmatpush1.xpose.msra.mxu0 0.0
        %832 = vmatprep.subr.mxu0 0.0
        %833 = vmatpush1.xpose.msra.mxu0 0.0
        %834 = vmatprep.subr.mxu0 0.0
        %835 = vmatpush1.xpose.msra.mxu0 0.0
        %836 = vmatprep.subr.mxu0 0.0
        %837 = vmatpush1.xpose.msra.mxu0 0.0
        %838 = vmatprep.subr.mxu0 0.0
        %839 = vmatpush1.xpose.msra.mxu0 0.0
        %840 = vmatprep.subr.mxu0 0.0
        %841 = vmatpush1.xpose.msra.mxu0 0.0
        %842 = vmatprep.subr.mxu0 0.0
        %843 = vmatpush1.xpose.msra.mxu0 0.0
        %844 = vmatprep.subr.mxu0 0.0
        %845 = vmatpush1.xpose.msra.mxu0 0.0
        %846 = vmatprep.subr.mxu0 0.0
        %847 = vmatpush1.xpose.msra.mxu0 0.0
        %848 = vmatprep.subr.mxu0 0.0
        %849 = vmatpush1.xpose.msra.mxu0 0.0
        %850 = vmatprep.subr.mxu0 0.0
        %851 = vmatpush1.xpose.msra.mxu0 0.0
        %852 = vmatprep.subr.mxu0 0.0
        %853 = vmatpush1.xpose.msra.mxu0 0.0
        %854 = vmatprep.subr.mxu0 0.0
        %855 = vmatpush1.xpose.msra.mxu0 0.0
        %856 = vmatprep.subr.mxu0 0.0
        %857 = vmatpush1.xpose.msra.mxu0 0.0
        %858 = vmatprep.subr.mxu0 0.0
        %859 = vmatpush1.xpose.msra.mxu0 0.0
        %860 = vmatprep.subr.mxu0 0.0
        %861 = vmatpush1.xpose.msra.mxu0 0.0
        %862 = vmatprep.subr.mxu0 0.0
        %863 = vmatpush1.xpose.msra.mxu0 0.0
        %864 = vmatprep.subr.mxu0 0.0
        %865 = vmatpush1.xpose.msra.mxu0 0.0
        %866 = vmatprep.subr.mxu0 0.0
        %867 = vmatpush1.xpose.msra.mxu0 0.0
        %868 = vmatprep.subr.mxu0 0.0
        %869 = vmatpush1.xpose.msra.mxu0 0.0
        %870 = vmatprep.subr.mxu0 0.0
        %871 = vmatpush1.xpose.msra.mxu0 0.0
        %872 = vmatprep.subr.mxu0 0.0
        %873 = vmatpush1.xpose.msra.mxu0 0.0
        %874 = vmatprep.subr.mxu0 0.0
        %875 = vmatpush1.xpose.msra.mxu0 0.0
        %876 = vmatprep.mubr.f32.mxu0 0.0
        %877 = vmatmul.mubr.f32.gmra.mrb[0].mxu0 %v804
        %v878 = vpop.f32.mrb[0].mxu0
        %v879 = vadd.f32 0.0, %v878
        %v880 = vpop.f32.mrb[0].mxu0
        %881 = vmatprep.mubr.f32.mxu0 0.0
        %882 = vmatmul.mubr.f32.gmra.mrb[0].mxu0 %v806
        %v883 = vpop.f32.mrb[0].mxu0
        %v884 = vadd.f32 0.0, %v883
        %v885 = vpop.f32.mrb[0].mxu0
        %886 = vdwg.mxu0
        %v887 = vmul.f32 %v792, 0.17677669
        %v888 = vmul.f32 %v797, 0.17677669
        %v889 = vmul.f32 %v879, 0.17677669
        %v890 = vmul.f32 %v884, 0.17677669
        %v891 = vld [vmem:[%s0] sm:$0xff]
        %v892 = vld [vmem:[%s0 + $0x8] sm:$0xff]
        %v893 = vadd.f32 %v887, %v891
        %v894 = vadd.f32 %v888, %v892
        %v895 = vadd.f32 %v889, %v891
        %v896 = vadd.f32 %v890, %v892
        %vm897 = vcmask 130048
        %v898 = vsel %vm897, %v893, -inf
        %899 = vmax.xlane.f32.xlu0 %v898
        %v900 = vpop.xlane.xlu0 %899
        %v901 = vsel %vm897, %v894, -inf
        %902 = vmax.xlane.f32.xlu0 %v901
        %v903 = vpop.xlane.xlu0 %902
        %v904 = vsel %vm897, %v895, -inf
        %905 = vmax.xlane.f32.xlu0 %v904
        %v906 = vpop.xlane.xlu0 %905
        %v907 = vsel %vm897, %v896, -inf
        %908 = vmax.xlane.f32.xlu0 %v907
        %v909 = vpop.xlane.xlu0 %908
        %v910 = vsub.f32 %v893, %v900
        %v911 = vsub.f32 %v894, %v903
        %v912 = vsub.f32 %v895, %v906
        %v913 = vsub.f32 %v896, %v909
        %v914 = vmul.f32 %v910, 1.442695
        %v915 = vpow.pop %v914
        %v916 = vmul.f32 %v911, 1.442695
        %v917 = vpow.pop %v916
        %v918 = vmul.f32 %v912, 1.442695
        %v919 = vpow.pop %v918
        %v920 = vmul.f32 %v913, 1.442695
        %v921 = vpow.pop %v920
        %v922 = vsel %vm897, %v915, 0.0
        %923 = vadd.xlane.f32.xlu0 %v922
        %v924 = vpop.xlane.xlu0 %923
        %v925 = vsel %vm897, %v917, 0.0
        %926 = vadd.xlane.f32.xlu0 %v925
        %v927 = vpop.xlane.xlu0 %926
        %v928 = vsel %vm897, %v919, 0.0
        %929 = vadd.xlane.f32.xlu0 %v928
        %v930 = vpop.xlane.xlu0 %929
        %v931 = vsel %vm897, %v921, 0.0
        %932 = vadd.xlane.f32.xlu0 %v931
        %v933 = vpop.xlane.xlu0 %932
        %v934 = vrcp.pop %v924
        %v935 = vrcp.pop %v927
        %v936 = vrcp.pop %v930
        %v937 = vrcp.pop %v933
        %v938 = vmul.f32 %v915, %v934
        %v939 = vmul.f32 %v917, %v935
        %v940 = vmul.f32 %v919, %v936
        %v941 = vmul.f32 %v921, %v937
        %v943 = vsel %vm897, %v938, 0
        %v946 = vsel %vm897, %v939, 0
        %948 = vmatprep.subr.mxu0 0.0
        %949 = vmatpush1.msra.mxu0 %v691
        %950 = vmatprep.subr.mxu0 0.0
        %951 = vmatpush1.msra.mxu0 %v697
        %952 = vmatprep.subr.mxu0 0.0
        %953 = vmatpush1.msra.mxu0 0.0
        %954 = vmatprep.subr.mxu0 0.0
        %955 = vmatpush1.msra.mxu0 0.0
        %956 = vmatprep.subr.mxu0 0.0
        %957 = vmatpush1.msra.mxu0 0.0
        %958 = vmatprep.subr.mxu0 0.0
        %959 = vmatpush1.msra.mxu0 0.0
        %960 = vmatprep.subr.mxu0 0.0
        %961 = vmatpush1.msra.mxu0 0.0
        %962 = vmatprep.subr.mxu0 0.0
        %963 = vmatpush1.msra.mxu0 0.0
        %964 = vmatprep.subr.mxu0 0.0
        %965 = vmatpush1.msra.mxu0 0.0
        %966 = vmatprep.subr.mxu0 0.0
        %967 = vmatpush1.msra.mxu0 0.0
        %968 = vmatprep.subr.mxu0 0.0
        %969 = vmatpush1.msra.mxu0 0.0
        %970 = vmatprep.subr.mxu0 0.0
        %971 = vmatpush1.msra.mxu0 0.0
        %972 = vmatprep.subr.mxu0 0.0
        %973 = vmatpush1.msra.mxu0 0.0
        %974 = vmatprep.subr.mxu0 0.0
        %975 = vmatpush1.msra.mxu0 0.0
        %976 = vmatprep.subr.mxu0 0.0
        %977 = vmatpush1.msra.mxu0 0.0
        %978 = vmatprep.subr.mxu0 0.0
        %979 = vmatpush1.msra.mxu0 0.0
        %980 = vmatprep.subr.mxu0 0.0
        %981 = vmatpush1.msra.mxu0 0.0
        %982 = vmatprep.subr.mxu0 0.0
        %983 = vmatpush1.msra.mxu0 0.0
        %984 = vmatprep.subr.mxu0 0.0
        %985 = vmatpush1.msra.mxu0 0.0
        %986 = vmatprep.subr.mxu0 0.0
        %987 = vmatpush1.msra.mxu0 0.0
        %988 = vmatprep.subr.mxu0 0.0
        %989 = vmatpush1.msra.mxu0 0.0
        %990 = vmatprep.subr.mxu0 0.0
        %991 = vmatpush1.msra.mxu0 0.0
        %992 = vmatprep.subr.mxu0 0.0
        %993 = vmatpush1.msra.mxu0 0.0
        %994 = vmatprep.subr.mxu0 0.0
        %995 = vmatpush1.msra.mxu0 0.0
        %996 = vmatprep.subr.mxu0 0.0
        %997 = vmatpush1.msra.mxu0 0.0
        %998 = vmatprep.subr.mxu0 0.0
        %999 = vmatpush1.msra.mxu0 0.0
        %1000 = vmatprep.subr.mxu0 0.0
        %1001 = vmatpush1.msra.mxu0 0.0
        %1002 = vmatprep.subr.mxu0 0.0
        %1003 = vmatpush1.msra.mxu0 0.0
        %1004 = vmatprep.subr.mxu0 0.0
        %1005 = vmatpush1.msra.mxu0 0.0
        %1006 = vmatprep.subr.mxu0 0.0
        %1007 = vmatpush1.msra.mxu0 0.0
        %1008 = vmatprep.subr.mxu0 0.0
        %1009 = vmatpush1.msra.mxu0 0.0
        %1010 = vmatprep.subr.mxu0 0.0
        %1011 = vmatpush1.msra.mxu0 0.0
        %1012 = vmatprep.mubr.f32.mxu0 0.0
        %1013 = vmatmul.mubr.f32.gmra.mrb[0].mxu0 %v943
        %v1014 = vpop.f32.mrb[0].mxu0
        %v1015 = vadd.f32 0.0, %v1014
        %v1016 = vpop.f32.mrb[0].mxu0
        %1017 = vmatprep.mubr.f32.mxu0 0.0
        %1018 = vmatmul.mubr.f32.gmra.mrb[0].mxu0 %v946
        %v1019 = vpop.f32.mrb[0].mxu0
        %v1020 = vadd.f32 0.0, %v1019
        %v1021 = vpop.f32.mrb[0].mxu0
        %1022 = vdwg.mxu0
        %v1024 = vsel %vm897, %v940, 0
        %v1027 = vsel %vm897, %v941, 0
        %1029 = vmatprep.subr.mxu0 0.0
        %1030 = vmatpush1.msra.mxu0 %v708
        %1031 = vmatprep.subr.mxu0 0.0
        %1032 = vmatpush1.msra.mxu0 %v710
        %1033 = vmatprep.subr.mxu0 0.0
        %1034 = vmatpush1.msra.mxu0 0.0
        %1035 = vmatprep.subr.mxu0 0.0
        %1036 = vmatpush1.msra.mxu0 0.0
        %1037 = vmatprep.subr.mxu0 0.0
        %1038 = vmatpush1.msra.mxu0 0.0
        %1039 = vmatprep.subr.mxu0 0.0
        %1040 = vmatpush1.msra.mxu0 0.0
        %1041 = vmatprep.subr.mxu0 0.0
        %1042 = vmatpush1.msra.mxu0 0.0
        %1043 = vmatprep.subr.mxu0 0.0
        %1044 = vmatpush1.msra.mxu0 0.0
        %1045 = vmatprep.subr.mxu0 0.0
        %1046 = vmatpush1.msra.mxu0 0.0
        %1047 = vmatprep.subr.mxu0 0.0
        %1048 = vmatpush1.msra.mxu0 0.0
        %1049 = vmatprep.subr.mxu0 0.0
        %1050 = vmatpush1.msra.mxu0 0.0
        %1051 = vmatprep.subr.mxu0 0.0
        %1052 = vmatpush1.msra.mxu0 0.0
        %1053 = vmatprep.subr.mxu0 0.0
        %1054 = vmatpush1.msra.mxu0 0.0
        %1055 = vmatprep.subr.mxu0 0.0
        %1056 = vmatpush1.msra.mxu0 0.0
        %1057 = vmatprep.subr.mxu0 0.0
        %1058 = vmatpush1.msra.mxu0 0.0
        %1059 = vmatprep.subr.mxu0 0.0
        %1060 = vmatpush1.msra.mxu0 0.0
        %1061 = vmatprep.subr.mxu0 0.0
        %1062 = vmatpush1.msra.mxu0 0.0
        %1063 = vmatprep.subr.mxu0 0.0
        %1064 = vmatpush1.msra.mxu0 0.0
        %1065 = vmatprep.subr.mxu0 0.0
        %1066 = vmatpush1.msra.mxu0 0.0
        %1067 = vmatprep.subr.mxu0 0.0
        %1068 = vmatpush1.msra.mxu0 0.0
        %1069 = vmatprep.subr.mxu0 0.0
        %1070 = vmatpush1.msra.mxu0 0.0
        %1071 = vmatprep.subr.mxu0 0.0
        %1072 = vmatpush1.msra.mxu0 0.0
        %1073 = vmatprep.subr.mxu0 0.0
        %1074 = vmatpush1.msra.mxu0 0.0
        %1075 = vmatprep.subr.mxu0 0.0
        %1076 = vmatpush1.msra.mxu0 0.0
        %1077 = vmatprep.subr.mxu0 0.0
        %1078 = vmatpush1.msra.mxu0 0.0
        %1079 = vmatprep.subr.mxu0 0.0
        %1080 = vmatpush1.msra.mxu0 0.0
        %1081 = vmatprep.subr.mxu0 0.0
        %1082 = vmatpush1.msra.mxu0 0.0
        %1083 = vmatprep.subr.mxu0 0.0
        %1084 = vmatpush1.msra.mxu0 0.0
        %1085 = vmatprep.subr.mxu0 0.0
        %1086 = vmatpush1.msra.mxu0 0.0
        %1087 = vmatprep.subr.mxu0 0.0
        %1088 = vmatpush1.msra.mxu0 0.0
        %1089 = vmatprep.subr.mxu0 0.0
        %1090 = vmatpush1.msra.mxu0 0.0
        %1091 = vmatprep.subr.mxu0 0.0
        %1092 = vmatpush1.msra.mxu0 0.0
        %1093 = vmatprep.mubr.f32.mxu0 0.0
        %1094 = vmatmul.mubr.f32.gmra.mrb[0].mxu0 %v1024
        %v1095 = vpop.f32.mrb[0].mxu0
        %v1096 = vadd.f32 0.0, %v1095
        %v1097 = vpop.f32.mrb[0].mxu0
        %1098 = vmatprep.mubr.f32.mxu0 0.0
        %1099 = vmatmul.mubr.f32.gmra.mrb[0].mxu0 %v1027
        %v1100 = vpop.f32.mrb[0].mxu0
        %v1101 = vadd.f32 0.0, %v1100
        %v1102 = vpop.f32.mrb[0].mxu0
        %1103 = vdwg.mxu0
        %v1104 = vsel %vm564, %v1015, 0.0
        %v1105 = vsel %vm564, %v1096, 0.0
        %v1106 = vadd.f32 %v1104, %v1105
        %v1107 = vsel %vm564, %v1020, 0.0
        %v1108 = vsel %vm564, %v1101, 0.0
        %v1109 = vadd.f32 %v1107, %v1108
        %v1110 = vadd.f32 %v1106, %v560
        %v1111 = vadd.f32 %v1109, %v561
        %v1112 = vld [vmem:[%s531] sm:$0x1]
        %v1113 = vld [vmem:[%s534] sm:$0x1]
        %v1114 = vsel %vm564, %v1110, 0.0
        %1115 = vadd.xlane.f32.xlu0 %v1114
        %v1116 = vpop.xlane.xlu0 %1115
        %v1117 = vsel %vm564, %v1111, 0.0
        %1118 = vadd.xlane.f32.xlu0 %v1117
        %v1119 = vpop.xlane.xlu0 %1118
        %v1120 = vmul.f32 %v1116, %v571
        %v1121 = vmul.f32 %v1119, %v571
        %v1122 = vsub.f32 %v1110, %v1120
        %v1123 = vsub.f32 %v1111, %v1121
        %v1124 = vmul.f32 %v1122, %v1122
        %v1125 = vmul.f32 %v1123, %v1123
        %v1126 = vsel %vm564, %v1124, 0.0
        %1127 = vadd.xlane.f32.xlu0 %v1126
        %v1128 = vpop.xlane.xlu0 %1127
        %v1129 = vsel %vm564, %v1125, 0.0
        %1130 = vadd.xlane.f32.xlu0 %v1129
        %v1131 = vpop.xlane.xlu0 %1130
        %v1132 = vmul.f32 %v1128, %v571
        %v1133 = vmul.f32 %v1131, %v571
        %v1134 = vadd.f32 %v1132, 1e-05
        %v1135 = vadd.f32 %v1133, 1e-05
        %v1136 = vrsqrt.pop %v1134
        %v1137 = vrsqrt.pop %v1135
        %v1138 = vmul.f32 %v1122, %v1136
        %v1139 = vmul.f32 %v1123, %v1137
        %v1141 = vlaneseq
        %v1142 = vshrl.u32 %v1141, 7
        %v1143 = vsub.s32 0, %v1142
        %v1144 = vrot.slane %v1112, %v1143
        %v1146 = vmul.f32 %v1138, %v1144
        %v1147 = vmul.f32 %v1139, %v1144
        %v1149 = vlaneseq
        %v1150 = vshrl.u32 %v1149, 7
        %v1151 = vsub.s32 0, %v1150
        %v1152 = vrot.slane %v1113, %v1151
        %v1154 = vadd.f32 %v1146, %v1152
        %v1155 = vadd.f32 %v1147, %v1152
        %v1156 = vld [vmem:[%s539] sm:$0xff]
        %v1157 = vld [vmem:[%s539 + $0x8] sm:$0xff]
        %v1158 = vld [vmem:[%s539 + $0x10] sm:$0xff]
        %v1159 = vld [vmem:[%s539 + $0x18] sm:$0xff]
        %v1160 = vld [vmem:[%s542] sm:$0x1]
        %v1162 = vlaneseq
        %v1163 = vshrl.u32 %v1162, 7
        %v1164 = vsub.s32 0, %v1163
        %v1165 = vrot.slane %v1160, %v1164
        %v1168 = vsel %vm564, %v1154, 0
        %v1171 = vsel %vm564, %v1155, 0
        %1173 = vmatprep.subr.mxu0 0.0
        %1174 = vmatpush1.msra.mxu0 %v1156
        %1175 = vmatprep.subr.mxu0 0.0
        %1176 = vmatpush1.msra.mxu0 %v1157
        %1177 = vmatprep.subr.mxu0 0.0
        %1178 = vmatpush1.msra.mxu0 %v1158
        %1179 = vmatprep.subr.mxu0 0.0
        %1180 = vmatpush1.msra.mxu0 %v1159
        %1181 = vmatprep.subr.mxu0 0.0
        %1182 = vmatpush1.msra.mxu0 0.0
        %1183 = vmatprep.subr.mxu0 0.0
        %1184 = vmatpush1.msra.mxu0 0.0
        %1185 = vmatprep.subr.mxu0 0.0
        %1186 = vmatpush1.msra.mxu0 0.0
        %1187 = vmatprep.subr.mxu0 0.0
        %1188 = vmatpush1.msra.mxu0 0.0
        %1189 = vmatprep.subr.mxu0 0.0
        %1190 = vmatpush1.msra.mxu0 0.0
        %1191 = vmatprep.subr.mxu0 0.0
        %1192 = vmatpush1.msra.mxu0 0.0
        %1193 = vmatprep.subr.mxu0 0.0
        %1194 = vmatpush1.msra.mxu0 0.0
        %1195 = vmatprep.subr.mxu0 0.0
        %1196 = vmatpush1.msra.mxu0 0.0
        %1197 = vmatprep.subr.mxu0 0.0
        %1198 = vmatpush1.msra.mxu0 0.0
        %1199 = vmatprep.subr.mxu0 0.0
        %1200 = vmatpush1.msra.mxu0 0.0
        %1201 = vmatprep.subr.mxu0 0.0
        %1202 = vmatpush1.msra.mxu0 0.0
        %1203 = vmatprep.subr.mxu0 0.0
        %1204 = vmatpush1.msra.mxu0 0.0
        %1205 = vmatprep.subr.mxu0 0.0
        %1206 = vmatpush1.msra.mxu0 0.0
        %1207 = vmatprep.subr.mxu0 0.0
        %1208 = vmatpush1.msra.mxu0 0.0
        %1209 = vmatprep.subr.mxu0 0.0
        %1210 = vmatpush1.msra.mxu0 0.0
        %1211 = vmatprep.subr.mxu0 0.0
        %1212 = vmatpush1.msra.mxu0 0.0
        %1213 = vmatprep.subr.mxu0 0.0
        %1214 = vmatpush1.msra.mxu0 0.0
        %1215 = vmatprep.subr.mxu0 0.0
        %1216 = vmatpush1.msra.mxu0 0.0
        %1217 = vmatprep.subr.mxu0 0.0
        %1218 = vmatpush1.msra.mxu0 0.0
        %1219 = vmatprep.subr.mxu0 0.0
        %1220 = vmatpush1.msra.mxu0 0.0
        %1221 = vmatprep.subr.mxu0 0.0
        %1222 = vmatpush1.msra.mxu0 0.0
        %1223 = vmatprep.subr.mxu0 0.0
        %1224 = vmatpush1.msra.mxu0 0.0
        %1225 = vmatprep.subr.mxu0 0.0
        %1226 = vmatpush1.msra.mxu0 0.0
        %1227 = vmatprep.subr.mxu0 0.0
        %1228 = vmatpush1.msra.mxu0 0.0
        %1229 = vmatprep.subr.mxu0 0.0
        %1230 = vmatpush1.msra.mxu0 0.0
        %1231 = vmatprep.subr.mxu0 0.0
        %1232 = vmatpush1.msra.mxu0 0.0
        %1233 = vmatprep.subr.mxu0 0.0
        %1234 = vmatpush1.msra.mxu0 0.0
        %1235 = vmatprep.subr.mxu0 0.0
        %1236 = vmatpush1.msra.mxu0 0.0
        %1237 = vmatprep.mubr.f32.mxu0 0.0
        %1238 = vmatmul.mubr.f32.gmra.mrb[0].mxu0 %v1168
        %v1239 = vpop.f32.mrb[0].mxu0
        %v1240 = vadd.f32 %v1165, %v1239
        %v1241 = vpop.f32.mrb[0].mxu0
        %1242 = vmatprep.mubr.f32.mxu0 0.0
        %1243 = vmatmul.mubr.f32.gmra.mrb[0].mxu0 %v1171
        %v1244 = vpop.f32.mrb[0].mxu0
        %v1245 = vadd.f32 %v1165, %v1244
        %v1246 = vpop.f32.mrb[0].mxu0
        %1247 = vdwg.mxu0
        %v1248 = vmax.f32 %v1240, 0.0
        %v1249 = vmax.f32 %v1245, 0.0
        %v1250 = vld [vmem:[%s547] sm:$0xff]
        %v1251 = vld [vmem:[%s547 + $0x8] sm:$0xff]
        %v1252 = vld [vmem:[%s547 + $0x10] sm:$0xff]
        %v1253 = vld [vmem:[%s547 + $0x18] sm:$0xff]
        %v1254 = vld [vmem:[%s547 + $0x20] sm:$0xff]
        %v1255 = vld [vmem:[%s547 + $0x28] sm:$0xff]
        %v1256 = vld [vmem:[%s547 + $0x30] sm:$0xff]
        %v1257 = vld [vmem:[%s547 + $0x38] sm:$0xff]
        %v1258 = vld [vmem:[%s547 + $0x40] sm:$0xff]
        %v1259 = vld [vmem:[%s547 + $0x48] sm:$0xff]
        %v1260 = vld [vmem:[%s547 + $0x50] sm:$0xff]
        %v1261 = vld [vmem:[%s547 + $0x58] sm:$0xff]
        %v1262 = vld [vmem:[%s547 + $0x60] sm:$0xff]
        %v1263 = vld [vmem:[%s547 + $0x68] sm:$0xff]
        %v1264 = vld [vmem:[%s547 + $0x70] sm:$0xff]
        %v1265 = vld [vmem:[%s547 + $0x78] sm:$0xff]
        %v1266 = vld [vmem:[%s550] sm:$0x1]
        %v1268 = vlaneseq
        %v1269 = vshrl.u32 %v1268, 7
        %v1270 = vsub.s32 0, %v1269
        %v1271 = vrot.slane %v1266, %v1270
        %1273 = vmatprep.subr.mxu0 0.0
        %1274 = vmatpush1.msra.mxu0 %v1250
        %1275 = vmatprep.subr.mxu0 0.0
        %1276 = vmatpush1.msra.mxu0 %v1251
        %1277 = vmatprep.subr.mxu0 0.0
        %1278 = vmatpush1.msra.mxu0 %v1252
        %1279 = vmatprep.subr.mxu0 0.0
        %1280 = vmatpush1.msra.mxu0 %v1253
        %1281 = vmatprep.subr.mxu0 0.0
        %1282 = vmatpush1.msra.mxu0 %v1254
        %1283 = vmatprep.subr.mxu0 0.0
        %1284 = vmatpush1.msra.mxu0 %v1255
        %1285 = vmatprep.subr.mxu0 0.0
        %1286 = vmatpush1.msra.mxu0 %v1256
        %1287 = vmatprep.subr.mxu0 0.0
        %1288 = vmatpush1.msra.mxu0 %v1257
        %1289 = vmatprep.subr.mxu0 0.0
        %1290 = vmatpush1.msra.mxu0 %v1258
        %1291 = vmatprep.subr.mxu0 0.0
        %1292 = vmatpush1.msra.mxu0 %v1259
        %1293 = vmatprep.subr.mxu0 0.0
        %1294 = vmatpush1.msra.mxu0 %v1260
        %1295 = vmatprep.subr.mxu0 0.0
        %1296 = vmatpush1.msra.mxu0 %v1261
        %1297 = vmatprep.subr.mxu0 0.0
        %1298 = vmatpush1.msra.mxu0 %v1262
        %1299 = vmatprep.subr.mxu0 0.0
        %1300 = vmatpush1.msra.mxu0 %v1263
        %1301 = vmatprep.subr.mxu0 0.0
        %1302 = vmatpush1.msra.mxu0 %v1264
        %1303 = vmatprep.subr.mxu0 0.0
        %1304 = vmatpush1.msra.mxu0 %v1265
        %1305 = vmatprep.subr.mxu0 0.0
        %1306 = vmatpush1.msra.mxu0 0.0
        %1307 = vmatprep.subr.mxu0 0.0
        %1308 = vmatpush1.msra.mxu0 0.0
        %1309 = vmatprep.subr.mxu0 0.0
        %1310 = vmatpush1.msra.mxu0 0.0
        %1311 = vmatprep.subr.mxu0 0.0
        %1312 = vmatpush1.msra.mxu0 0.0
        %1313 = vmatprep.subr.mxu0 0.0
        %1314 = vmatpush1.msra.mxu0 0.0
        %1315 = vmatprep.subr.mxu0 0.0
        %1316 = vmatpush1.msra.mxu0 0.0
        %1317 = vmatprep.subr.mxu0 0.0
        %1318 = vmatpush1.msra.mxu0 0.0
        %1319 = vmatprep.subr.mxu0 0.0
        %1320 = vmatpush1.msra.mxu0 0.0
        %1321 = vmatprep.subr.mxu0 0.0
        %1322 = vmatpush1.msra.mxu0 0.0
        %1323 = vmatprep.subr.mxu0 0.0
        %1324 = vmatpush1.msra.mxu0 0.0
        %1325 = vmatprep.subr.mxu0 0.0
        %1326 = vmatpush1.msra.mxu0 0.0
        %1327 = vmatprep.subr.mxu0 0.0
        %1328 = vmatpush1.msra.mxu0 0.0
        %1329 = vmatprep.subr.mxu0 0.0
        %1330 = vmatpush1.msra.mxu0 0.0
        %1331 = vmatprep.subr.mxu0 0.0
        %1332 = vmatpush1.msra.mxu0 0.0
        %1333 = vmatprep.subr.mxu0 0.0
        %1334 = vmatpush1.msra.mxu0 0.0
        %1335 = vmatprep.subr.mxu0 0.0
        %1336 = vmatpush1.msra.mxu0 0.0
        %1337 = vmatprep.mubr.f32.mxu0 0.0
        %1338 = vmatmul.mubr.f32.gmra.mrb[0].mxu0 %v1248
        %v1339 = vpop.f32.mrb[0].mxu0
        %v1340 = vadd.f32 %v1271, %v1339
        %v1341 = vpop.f32.mrb[0].mxu0
        %1342 = vmatprep.mubr.f32.mxu0 0.0
        %1343 = vmatmul.mubr.f32.gmra.mrb[0].mxu0 %v1249
        %v1344 = vpop.f32.mrb[0].mxu0
        %v1345 = vadd.f32 %v1271, %v1344
        %v1346 = vpop.f32.mrb[0].mxu0
        %1347 = vdwg.mxu0
        %v1348 = vadd.f32 %v1340, %v1154
        %v1349 = vadd.f32 %v1345, %v1155
        %1350 = vst.msk [vmem:[#allocation2] sm:$0xff] %vm564, %v1348
        %1351 = vst.msk [vmem:[#allocation2 + $0x8] sm:$0xff] %vm564, %v1349
        %p1352 = scmp.eq.s32.totalorder %s25, 1
        // Predicated region
        $region77: #{tpu_custom_call.1} parent=71 // pred_check
          %p1353 = pneg %p1352
        $region78: #{tpu_custom_call.1} parent=71 // pred_check_branch
          %1355 = sbr.rel (%p1353) target = $region80
        $region79: #{tpu_custom_call.1} parent=71 // pred_region
          %v1356 = vld [vmem:[%s11] sm:$0xff]
          %v1357 = vld [vmem:[%s11 + $0x8] sm:$0xff]
          %v1358 = vld [vmem:[%s11 + $0x10] sm:$0xff]
          %v1359 = vld [vmem:[%s11 + $0x18] sm:$0xff]
          %v1360 = vld [vmem:[%s12] sm:$0x1]
          %v1362 = vlaneseq
          %v1363 = vshrl.u32 %v1362, 7
          %v1364 = vsub.s32 0, %v1363
          %v1365 = vrot.slane %v1360, %v1364
          %v1368 = vsel %vm564, %v1348, 0
          %v1371 = vsel %vm564, %v1349, 0
          %1373 = vmatprep.subr.mxu0 0.0
          %1374 = vmatpush1.msra.mxu0 %v1356
          %1375 = vmatprep.subr.mxu0 0.0
          %1376 = vmatpush1.msra.mxu0 %v1357
          %1377 = vmatprep.subr.mxu0 0.0
          %1378 = vmatpush1.msra.mxu0 %v1358
          %1379 = vmatprep.subr.mxu0 0.0
          %1380 = vmatpush1.msra.mxu0 %v1359
          %1381 = vmatprep.subr.mxu0 0.0
          %1382 = vmatpush1.msra.mxu0 0.0
          %1383 = vmatprep.subr.mxu0 0.0
          %1384 = vmatpush1.msra.mxu0 0.0
          %1385 = vmatprep.subr.mxu0 0.0
          %1386 = vmatpush1.msra.mxu0 0.0
          %1387 = vmatprep.subr.mxu0 0.0
          %1388 = vmatpush1.msra.mxu0 0.0
          %1389 = vmatprep.subr.mxu0 0.0
          %1390 = vmatpush1.msra.mxu0 0.0
          %1391 = vmatprep.subr.mxu0 0.0
          %1392 = vmatpush1.msra.mxu0 0.0
          %1393 = vmatprep.subr.mxu0 0.0
          %1394 = vmatpush1.msra.mxu0 0.0
          %1395 = vmatprep.subr.mxu0 0.0
          %1396 = vmatpush1.msra.mxu0 0.0
          %1397 = vmatprep.subr.mxu0 0.0
          %1398 = vmatpush1.msra.mxu0 0.0
          %1399 = vmatprep.subr.mxu0 0.0
          %1400 = vmatpush1.msra.mxu0 0.0
          %1401 = vmatprep.subr.mxu0 0.0
          %1402 = vmatpush1.msra.mxu0 0.0
          %1403 = vmatprep.subr.mxu0 0.0
          %1404 = vmatpush1.msra.mxu0 0.0
          %1405 = vmatprep.subr.mxu0 0.0
          %1406 = vmatpush1.msra.mxu0 0.0
          %1407 = vmatprep.subr.mxu0 0.0
          %1408 = vmatpush1.msra.mxu0 0.0
          %1409 = vmatprep.subr.mxu0 0.0
          %1410 = vmatpush1.msra.mxu0 0.0
          %1411 = vmatprep.subr.mxu0 0.0
          %1412 = vmatpush1.msra.mxu0 0.0
          %1413 = vmatprep.subr.mxu0 0.0
          %1414 = vmatpush1.msra.mxu0 0.0
          %1415 = vmatprep.subr.mxu0 0.0
          %1416 = vmatpush1.msra.mxu0 0.0
          %1417 = vmatprep.subr.mxu0 0.0
          %1418 = vmatpush1.msra.mxu0 0.0
          %1419 = vmatprep.subr.mxu0 0.0
          %1420 = vmatpush1.msra.mxu0 0.0
          %1421 = vmatprep.subr.mxu0 0.0
          %1422 = vmatpush1.msra.mxu0 0.0
          %1423 = vmatprep.subr.mxu0 0.0
          %1424 = vmatpush1.msra.mxu0 0.0
          %1425 = vmatprep.subr.mxu0 0.0
          %1426 = vmatpush1.msra.mxu0 0.0
          %1427 = vmatprep.subr.mxu0 0.0
          %1428 = vmatpush1.msra.mxu0 0.0
          %1429 = vmatprep.subr.mxu0 0.0
          %1430 = vmatpush1.msra.mxu0 0.0
          %1431 = vmatprep.subr.mxu0 0.0
          %1432 = vmatpush1.msra.mxu0 0.0
          %1433 = vmatprep.subr.mxu0 0.0
          %1434 = vmatpush1.msra.mxu0 0.0
          %1435 = vmatprep.subr.mxu0 0.0
          %1436 = vmatpush1.msra.mxu0 0.0
          %1437 = vmatprep.mubr.f32.mxu0 0.0
          %1438 = vmatmul.mubr.f32.gmra.mrb[0].mxu0 %v1368
          %v1439 = vpop.f32.mrb[0].mxu0
          %v1440 = vadd.f32 %v1365, %v1439
          %v1441 = vpop.f32.mrb[0].mxu0
          %1442 = vmatprep.mubr.f32.mxu0 0.0
          %1443 = vmatmul.mubr.f32.gmra.mrb[0].mxu0 %v1371
          %v1444 = vpop.f32.mrb[0].mxu0
          %v1445 = vadd.f32 %v1365, %v1444
          %v1446 = vpop.f32.mrb[0].mxu0
          %1447 = vdwg.mxu0
          %1448 = vst [vmem:[#allocation3] sm:$0xff] %v1440
          %1449 = vst [vmem:[#allocation3 + $0x8] sm:$0xff] %v1445
        $region80: #{tpu_custom_call.1} parent=71 // pred_fallthru
          _
        // Predicated region
        $region81: #{tpu_custom_call.1} parent=71 // pred_check
          %p1450 = pneg %p356
        $region82: #{tpu_custom_call.1} parent=71 // pred_check_branch
          %1452 = sbr.rel (%p1450) target = $region84
        $region83: #{tpu_custom_call.1} parent=71 // pred_region
          %s1454 = ssub.s32 256, 256
          %1455 = vsyncadd [#allocation4], %s1454
          %s1456 = sshll.u32 [#allocation3], 4
          %s1457 = int_to_ptr.vmem [resolvable:$true] %s1456
          %1462 = dma.vmem_to_hbm [thread:$0]  %s1457, 256, %s13, [#allocation4], 128, 128, 8
        $region84: #{tpu_custom_call.1} parent=71 // pred_fallthru
          _
        // Predicated region
        $region85: #{tpu_custom_call.1} parent=71 // pred_check
          %p1463 = pneg %p356
        $region86: #{tpu_custom_call.1} parent=71 // pred_check_branch
          %1465 = sbr.rel (%p1463) target = $region88
        $region87: #{tpu_custom_call.1} parent=71 // pred_region
          %1466 = dma.done [#allocation4], 256
        $region88: #{tpu_custom_call.1} parent=71 // pred_fallthru
          _
      $region72: #{tpu_custom_call.1} parent=5 // pred_fallthru
        _
      %p1467 = scmp.le.s32.totalorder 2, %s20
      // Predicated region
      $region89: #{tpu_custom_call.1} parent=5 // pred_check
        %p1468 = pneg %p1467
      $region90: #{tpu_custom_call.1} parent=5 // pred_check_branch
        %1470 = sbr.rel (%p1468) target = $region92
      $region91: #{tpu_custom_call.1} parent=5 // pred_region
        %s1471 = ssub.s32 %s20, 2
      $region92: #{tpu_custom_call.1} parent=5 // pred_fallthru
        _
    $region6: #{tpu_custom_call.1} parent=1 // loop_footer
      %s24 = sadd.s32 1, %s20
    $region7: #{tpu_custom_call.1} parent=1 // loop_footer_branch
      %19 = sbr.rel target = $region3
    $region8: #{tpu_custom_call.1} parent=1 // loop_exit
      _
    %1472 = vsyncpa [#allocation4], 1
    %s1473 = scalar_lea.sflag [#allocation4], 1
    %1474 = vsyncpa %s1473, 1

</llo_original>
